<compile_context>
chip_gen: v5e
topology: v5e:2x2
jax: 0.10.0
libtpu: 0.0.40
codegen_flags: <defaults>
</compile_context>

<pallas_src>
import functools

import jax
import jax.numpy as jnp
from jax.experimental import pallas as pl
from jax.experimental.pallas import tpu as pltpu

KSIZE = 4
BN_EPS = 1e-5
LEAKY_SLOPE = 0.2

LANE = 128        # lane width: Cout / K padding target
SUBLANE = 8
TM_DEFAULT = 256  # row tile (feedback: 256..1024; sized for v7x 64 MiB VMEM)


# ---------------------------------------------------------------------------
# Pallas kernels
# ---------------------------------------------------------------------------
def _gemm_bias_act_kernel(x_ref, w_ref, b_ref, o_ref, *, act):
    # x: (TM, Kp) bf16, w: (Kp, Cp) bf16 (resident), b: (1, Cp) f32 (resident)
    y = jnp.dot(x_ref[...], w_ref[...], preferred_element_type=jnp.float32)
    y = y + b_ref[...]
    if act == "leaky":
        y = jnp.where(y > 0, y, LEAKY_SLOPE * y)
    else:  # sigmoid: f32 math, exp on EUP, approx reciprocal off the VALU
        y = pl.reciprocal(1.0 + jnp.exp(-y), approx=True)
    o_ref[...] = y


def _gemm_stats_kernel(x_ref, w_ref, y_ref, stats_ref):
    # Conv-as-GEMM (bias dropped: BN's mean subtraction cancels it) plus
    # per-row-tile partial sum / sum-of-squares so batch statistics remain
    # exact when the row dimension is tiled across the grid.
    y = jnp.dot(x_ref[...], w_ref[...], preferred_element_type=jnp.float32)
    y_ref[...] = y
    s = jnp.sum(y, axis=0, keepdims=True)
    ss = jnp.sum(y * y, axis=0, keepdims=True)
    pad = jnp.zeros((SUBLANE - 2, y.shape[1]), jnp.float32)
    stats_ref[...] = jnp.concatenate([s, ss, pad], axis=0)


def _affine_leaky_kernel(y_ref, scale_ref, shift_ref, o_ref):
    # BatchNorm folded into one FMA per element: y * scale + shift, then leaky.
    y = y_ref[...] * scale_ref[...] + shift_ref[...]
    o_ref[...] = jnp.where(y > 0, y, LEAKY_SLOPE * y)


# ---------------------------------------------------------------------------
# Wrappers: padding, tiling, pallas_call plumbing
# ---------------------------------------------------------------------------
def _round_up(x, m):
    return (x + m - 1) // m * m


def _pad2d(a, rows, cols):
    r, c = a.shape
    return jnp.pad(a, ((0, rows - r), (0, cols - c)))


def _row_tiling(P, tm_max):
    p8 = _round_up(max(P, SUBLANE), SUBLANE)
    tm = min(tm_max, p8)
    p_pad = _round_up(p8, tm)
    return p_pad, tm, p_pad // tm


def _parallel_params():
    # Row-tile axis is embarrassingly parallel -> lets v7x split across 2 TCs.
    return pltpu.CompilerParams(dimension_semantics=("parallel",))


def pallas_conv_gemm(patches, w, b, act, *, tm=TM_DEFAULT):
    P, K = patches.shape
    Cout = w.shape[1]
    Kp = _round_up(K, LANE)
    Cp = _round_up(Cout, LANE)
    Ppad, tm, ntiles = _row_tiling(P, tm)

    xp = _pad2d(patches, Ppad, Kp).astype(jnp.bfloat16)
    wp = _pad2d(w, Kp, Cp).astype(jnp.bfloat16)
    bp = _pad2d(b, 1, Cp)

    out = pl.pallas_call(
        functools.partial(_gemm_bias_act_kernel, act=act),
        out_shape=jax.ShapeDtypeStruct((Ppad, Cp), jnp.float32),
        grid=(ntiles,),
        in_specs=[pl.BlockSpec((tm, Kp), lambda i: (i, 0)),
                  pl.BlockSpec((Kp, Cp), lambda i: (0, 0)),
                  pl.BlockSpec((1, Cp), lambda i: (0, 0))],
        out_specs=pl.BlockSpec((tm, Cp), lambda i: (i, 0)),
        compiler_params=_parallel_params(),
    )(xp, wp, bp)
    return out[:P, :Cout]


def pallas_conv_gemm_bn(patches, w, gamma, beta, *, tm=TM_DEFAULT):
    P, K = patches.shape
    Cout = w.shape[1]
    Kp = _round_up(K, LANE)
    Cp = _round_up(Cout, LANE)
    Ppad, tm, ntiles = _row_tiling(P, tm)

    xp = _pad2d(patches, Ppad, Kp).astype(jnp.bfloat16)
    wp = _pad2d(w, Kp, Cp).astype(jnp.bfloat16)

    # Pass 1: tiled GEMM + per-tile partial statistics (padded rows are zero
    # and bias-free, so they contribute exactly zero to sum / sumsq).
    y, stats = pl.pallas_call(
        _gemm_stats_kernel,
        out_shape=(jax.ShapeDtypeStruct((Ppad, Cp), jnp.float32),
                   jax.ShapeDtypeStruct((ntiles * SUBLANE, Cp), jnp.float32)),
        grid=(ntiles,),
        in_specs=[pl.BlockSpec((tm, Kp), lambda i: (i, 0)),
                  pl.BlockSpec((Kp, Cp), lambda i: (0, 0))],
        out_specs=(pl.BlockSpec((tm, Cp), lambda i: (i, 0)),
                   pl.BlockSpec((SUBLANE, Cp), lambda i: (i, 0))),
        compiler_params=_parallel_params(),
    )(xp, wp)

    # Reduce the tiny per-tile partials and fold BN into one scale/shift pair.
    stats = stats.reshape(ntiles, SUBLANE, Cp)
    tot = jnp.sum(stats[:, 0, :], axis=0)
    tot_sq = jnp.sum(stats[:, 1, :], axis=0)
    mean = tot / P
    var = jnp.maximum(tot_sq / P - mean * mean, 0.0)   # biased var (BN train)
    gamma_p = jnp.pad(gamma.reshape(-1), (0, Cp - Cout))
    beta_p = jnp.pad(beta.reshape(-1), (0, Cp - Cout))
    scale = gamma_p * jax.lax.rsqrt(var + BN_EPS)
    shift = beta_p - mean * scale
    scale = scale.reshape(1, Cp)
    shift = shift.reshape(1, Cp)

    # Pass 2: apply folded BN affine + LeakyReLU, tiled over rows.
    out = pl.pallas_call(
        _affine_leaky_kernel,
        out_shape=jax.ShapeDtypeStruct((Ppad, Cp), jnp.float32),
        grid=(ntiles,),
        in_specs=[pl.BlockSpec((tm, Cp), lambda i: (i, 0)),
                  pl.BlockSpec((1, Cp), lambda i: (0, 0)),
                  pl.BlockSpec((1, Cp), lambda i: (0, 0))],
        out_specs=pl.BlockSpec((tm, Cp), lambda i: (i, 0)),
        compiler_params=_parallel_params(),
    )(y, scale, shift)
    return out[:P, :Cout]


# ---------------------------------------------------------------------------
# JAX glue: im2col, parameter init, network forward
# ---------------------------------------------------------------------------
def im2col(x, k, stride, pad):
    """x: (N, H, W, C) -> (N*Ho*Wo, k*k*C). Row order (N, Ho, Wo);
    column order (kh, kw, Cin), matching the weight layout below."""
    N, H, W, C = x.shape
    xp = jnp.pad(x, ((0, 0), (pad, pad), (pad, pad), (0, 0)))
    Ho = (H + 2 * pad - k) // stride + 1
    Wo = (W + 2 * pad - k) // stride + 1
    cols = []
    for i in range(k):
        for j in range(k):
            cols.append(xp[:, i:i + (Ho - 1) * stride + 1:stride,
                           j:j + (Wo - 1) * stride + 1:stride, :])
    p = jnp.stack(cols, axis=3)  # (N, Ho, Wo, k*k, C)
    return p.reshape(N * Ho * Wo, k * k * C), (N, Ho, Wo)


def init_discriminator(key, input_nc=3, ndf=8, num_layers=3):
    """Synthetic parameters matching the PyTorch module's layer shapes.
    Conv weights are stored as (kh*kw*Cin, Cout): the PyTorch (Cout,Cin,kh,kw)
    tensor permuted to (kh,kw,Cin,Cout) and flattened.
    Returns (params, config): params is a pytree of arrays only (jit-safe);
    config carries the static structure (stride / has-BN / activation)."""

    def conv_init(k_, cin, cout, with_bias):
        kw_, kb_ = jax.random.split(k_)
        fan_in = cin * KSIZE * KSIZE
        bound = 1.0 / (fan_in ** 0.5)
        w = jax.random.uniform(kw_, (KSIZE, KSIZE, cin, cout),
                               jnp.float32, -bound, bound)
        w = w.reshape(KSIZE * KSIZE * cin, cout)
        if not with_bias:
            return w, None
        b = jax.random.uniform(kb_, (1, cout), jnp.float32, -bound, bound)
        return w, b

    keys = jax.random.split(key, num_layers + 1)
    params, config = [], []

    w, b = conv_init(keys[0], input_nc + 1, ndf, True)
    params.append(dict(w=w, b=b))
    config.append(dict(stride=2, bn=False, act="leaky"))

    nf_mult = 1
    for n in range(1, num_layers):
        prev, nf_mult = nf_mult, min(2 ** n, 8)
        # Conv bias is mathematically cancelled by BatchNorm's mean
        # subtraction, so it is folded away (dropped) for BN layers.
        w, _ = conv_init(keys[n], ndf * prev, ndf * nf_mult, False)
        params.append(dict(w=w,
                           gamma=jnp.ones((1, ndf * nf_mult), jnp.float32),
                           beta=jnp.zeros((1, ndf * nf_mult), jnp.float32)))
        config.append(dict(stride=2, bn=True, act="leaky"))

    w, b = conv_init(keys[num_layers], ndf * nf_mult, 1, True)
    params.append(dict(w=w, b=b))
    config.append(dict(stride=1, bn=False, act="sigmoid"))
    return params, tuple(config)


def discriminator_forward(params, img, segmap, *, config):
    # torch.cat((img, segmap), dim=1) in NCHW, then NCHW -> NHWC.
    x = jnp.concatenate([img, segmap], axis=1)
    x = jnp.transpose(x, (0, 2, 3, 1)).astype(jnp.float32)
    for p, cfg in zip(params, config):
        patches, (N, Ho, Wo) = im2col(x, KSIZE, cfg["stride"], 1)
        if cfg["bn"]:
            y = pallas_conv_gemm_bn(patches, p["w"], p["gamma"], p["beta"])
        else:
            y = pallas_conv_gemm(patches, p["w"], p["b"], cfg["act"])
        x = y.reshape(N, Ho, Wo, -1)
    # back to NCHW like the PyTorch module's output
    return jnp.transpose(x, (0, 3, 1, 2))


def reference_forward(params, config, img, segmap):
    """Pure-JAX f32 reference of the same forward pass (for validation)."""
    x = jnp.concatenate([img, segmap], axis=1)
    x = jnp.transpose(x, (0, 2, 3, 1)).astype(jnp.float32)
    for p, cfg in zip(params, config):
        patches, (N, Ho, Wo) = im2col(x, KSIZE, cfg["stride"], 1)
        y = patches @ p["w"]
        if cfg["bn"]:
            mu = jnp.mean(y, axis=0, keepdims=True)
            var = jnp.mean((y - mu) ** 2, axis=0, keepdims=True)
            y = (y - mu) * jax.lax.rsqrt(var + BN_EPS)
            y = y * p["gamma"] + p["beta"]
            y = jnp.where(y > 0, y, LEAKY_SLOPE * y)
        else:
            y = y + p["b"]
            if cfg["act"] == "leaky":
                y = jnp.where(y > 0, y, LEAKY_SLOPE * y)
            else:
                y = jax.nn.sigmoid(y)
        x = y.reshape(N, Ho, Wo, -1)
    return jnp.transpose(x, (0, 3, 1, 2))


if __name__ == "__main__":
    key = jax.random.PRNGKey(0)
    kp, ki, ks = jax.random.split(key, 3)

    # Small but structurally faithful: input_nc=3 (+1 segmap ch), ndf=8, 3 layers.
    params, config = init_discriminator(kp, input_nc=3, ndf=8, num_layers=3)

    img = jax.random.normal(ki, (2, 3, 16, 16), jnp.float32)     # NCHW
    segmap = jax.random.normal(ks, (2, 1, 16, 16), jnp.float32)  # NCHW

    # config is static (strides / activations) -> bind it outside jit so only
    # arrays are traced (fixes the previous "str as abstract array" TypeError).
    fwd = jax.jit(functools.partial(discriminator_forward, config=config))
    out = jax.block_until_ready(fwd(params, img, segmap))

    # 16 -> 8 -> 4 -> 2 (stride-2 convs) -> 1 (final stride-1 k=4 p=1 conv)
    assert out.shape == (2, 1, 1, 1), out.shape
    assert bool(jnp.all(jnp.isfinite(out)))
    assert bool(jnp.all((out >= -1e-2) & (out <= 1.0 + 1e-2)))

    # Validate against the pure-JAX f32 reference (bf16 MXU operands -> loose tol).
    ref = reference_forward(params, config, img, segmap)
    assert bool(jnp.allclose(out, ref, atol=0.1, rtol=0.1)), (out, ref)

    # Multi-tile sanity check: exercise a >1-step row grid and the cross-tile
    # BatchNorm partial-sum reduction against a pure-JAX reference.
    kx, kw2 = jax.random.split(jax.random.PRNGKey(1))
    xt = jax.random.normal(kx, (96, 128), jnp.float32)
    wt = jax.random.normal(kw2, (128, 16), jnp.float32) * 0.1
    gt = jnp.ones((1, 16), jnp.float32)
    bt = jnp.zeros((1, 16), jnp.float32)
    got = pallas_conv_gemm_bn(xt, wt, gt, bt, tm=32)   # 3 row tiles
    yt = xt @ wt
    mu = yt.mean(0, keepdims=True)
    vr = ((yt - mu) ** 2).mean(0, keepdims=True)
    want = (yt - mu) * jax.lax.rsqrt(vr + BN_EPS)
    want = jnp.where(want > 0, want, LEAKY_SLOPE * want)
    assert bool(jnp.allclose(got, want, atol=0.08, rtol=0.08)), \
        float(jnp.max(jnp.abs(got - want)))

    print("KERNEL_OK")
</pallas_src>

<mosaic_0001>
module attributes {stable_mosaic.version = 11 : i64} {
  func.func @_gemm_bias_act_kernel(%arg0: i32, %arg1: memref<128x128xbf16, #tpu.memory_space<vmem>>, %arg2: memref<128x128xbf16, #tpu.memory_space<vmem>>, %arg3: memref<1x128xf32, #tpu.memory_space<vmem>>, %arg4: memref<128x128xf32, #tpu.memory_space<vmem>>) attributes {dimension_semantics = [#tpu.dimension_semantics<parallel>], iteration_bounds = array<i64: 1>, scalar_prefetch = 0 : i64, scratch_operands = 0 : i64, tpu.core_type = #tpu.core_type<tc>, window_params = [{transform_indices = @transform_0, window_bounds = array<i64: 128, 128>}, {pipeline_mode = #tpu.pipeline_mode<synchronous>, transform_indices = @transform_1, window_bounds = array<i64: 128, 128>}, {pipeline_mode = #tpu.pipeline_mode<synchronous>, transform_indices = @transform_2, window_bounds = array<i64: 1, 128>}, {transform_indices = @transform_3, window_bounds = array<i64: 128, 128>}]} {
    %c0 = arith.constant 0 : index
    %c0_0 = arith.constant 0 : index
    %0 = vector.load %arg1[%c0, %c0_0] : memref<128x128xbf16, #tpu.memory_space<vmem>>, vector<128x128xbf16>
    %c0_1 = arith.constant 0 : index
    %c0_2 = arith.constant 0 : index
    %1 = vector.load %arg2[%c0_1, %c0_2] : memref<128x128xbf16, #tpu.memory_space<vmem>>, vector<128x128xbf16>
    %cst = arith.constant dense<0.000000e+00> : vector<128x128xf32>
    %2 = tpu.matmul %0, %1, %cst {dimension_numbers = #tpu.dot_dimension_numbers<[1], [0], [0], [1], [0, 0, 1, 1], [], []>} : vector<128x128xbf16>, vector<128x128xbf16>, vector<128x128xf32> -> vector<128x128xf32>
    %c0_3 = arith.constant 0 : index
    %c0_4 = arith.constant 0 : index
    %3 = vector.load %arg3[%c0_3, %c0_4] : memref<1x128xf32, #tpu.memory_space<vmem>>, vector<1x128xf32>
    %4 = vector.broadcast %3 : vector<1x128xf32> to vector<128x128xf32>
    %5 = arith.addf %2, %4 : vector<128x128xf32>
    %cst_5 = arith.constant 0.000000e+00 : f32
    %6 = vector.broadcast %cst_5 : f32 to vector<128x128xf32>
    %7 = arith.cmpf ogt, %5, %6 : vector<128x128xf32>
    %cst_6 = arith.constant 2.000000e-01 : f32
    %8 = vector.broadcast %cst_6 : f32 to vector<128x128xf32>
    %9 = arith.mulf %8, %5 : vector<128x128xf32>
    %10 = arith.select %7, %5, %9 : vector<128x128xi1>, vector<128x128xf32>
    %c0_7 = arith.constant 0 : index
    %c0_8 = arith.constant 0 : index
    %11 = vector.load %arg4[%c0_7, %c0_8] : memref<128x128xf32, #tpu.memory_space<vmem>>, vector<128x128xf32>
    tpu.vector_store %arg4[%c0_7, %c0_8], %10 {strides = array<i32>} : memref<128x128xf32, #tpu.memory_space<vmem>>, vector<128x128xf32>,
    return
  }
  func.func @transform_0(%arg0: i32) -> (i32, i32) {
    %c0_i32 = arith.constant 0 : i32
    %c0_i32_0 = arith.constant 0 : i32
    return %arg0, %c0_i32 : i32, i32
  }
  func.func @transform_1(%arg0: i32) -> (i32, i32) {
    %c0_i32 = arith.constant 0 : i32
    %c0_i32_0 = arith.constant 0 : i32
    %c0_i32_1 = arith.constant 0 : i32
    return %c0_i32, %c0_i32_0 : i32, i32
  }
  func.func @transform_2(%arg0: i32) -> (i32, i32) {
    %c0_i32 = arith.constant 0 : i32
    %c0_i32_0 = arith.constant 0 : i32
    %c0_i32_1 = arith.constant 0 : i32
    return %c0_i32, %c0_i32_0 : i32, i32
  }
  func.func @transform_3(%arg0: i32) -> (i32, i32) {
    %c0_i32 = arith.constant 0 : i32
    %c0_i32_0 = arith.constant 0 : i32
    return %arg0, %c0_i32 : i32, i32
  }
}

module attributes {stable_mosaic.version = 11 : i64} {
  func.func @_gemm_stats_kernel(%arg0: i32, %arg1: memref<32x128xbf16, #tpu.memory_space<vmem>>, %arg2: memref<128x128xbf16, #tpu.memory_space<vmem>>, %arg3: memref<32x128xf32, #tpu.memory_space<vmem>>, %arg4: memref<8x128xf32, #tpu.memory_space<vmem>>) attributes {dimension_semantics = [#tpu.dimension_semantics<parallel>], iteration_bounds = array<i64: 1>, scalar_prefetch = 0 : i64, scratch_operands = 0 : i64, tpu.core_type = #tpu.core_type<tc>, window_params = [{transform_indices = @transform_0, window_bounds = array<i64: 32, 128>}, {pipeline_mode = #tpu.pipeline_mode<synchronous>, transform_indices = @transform_1, window_bounds = array<i64: 128, 128>}, {transform_indices = @transform_2, window_bounds = array<i64: 32, 128>}, {transform_indices = @transform_3, window_bounds = array<i64: 8, 128>}]} {
    %c0 = arith.constant 0 : index
    %c0_0 = arith.constant 0 : index
    %0 = vector.load %arg1[%c0, %c0_0] : memref<32x128xbf16, #tpu.memory_space<vmem>>, vector<32x128xbf16>
    %c0_1 = arith.constant 0 : index
    %c0_2 = arith.constant 0 : index
    %1 = vector.load %arg2[%c0_1, %c0_2] : memref<128x128xbf16, #tpu.memory_space<vmem>>, vector<128x128xbf16>
    %cst = arith.constant dense<0.000000e+00> : vector<32x128xf32>
    %2 = tpu.matmul %0, %1, %cst {dimension_numbers = #tpu.dot_dimension_numbers<[1], [0], [0], [1], [0, 0, 1, 1], [], []>} : vector<32x128xbf16>, vector<128x128xbf16>, vector<32x128xf32> -> vector<32x128xf32>
    %c0_3 = arith.constant 0 : index
    %c0_4 = arith.constant 0 : index
    %3 = vector.load %arg3[%c0_3, %c0_4] : memref<32x128xf32, #tpu.memory_space<vmem>>, vector<32x128xf32>
    tpu.vector_store %arg3[%c0_3, %c0_4], %2 {strides = array<i32>} : memref<32x128xf32, #tpu.memory_space<vmem>>, vector<32x128xf32>,
    %cst_5 = arith.constant dense<0.000000e+00> : vector<128xf32>
    %4 = vector.multi_reduction <add>, %2, %cst_5 [0] : vector<32x128xf32> to vector<128xf32>
    %5 = vector.shape_cast %4 : vector<128xf32> to vector<1x128xf32>
    %6 = arith.mulf %2, %2 : vector<32x128xf32>
    %cst_6 = arith.constant dense<0.000000e+00> : vector<128xf32>
    %7 = vector.multi_reduction <add>, %6, %cst_6 [0] : vector<32x128xf32> to vector<128xf32>
    %8 = vector.shape_cast %7 : vector<128xf32> to vector<1x128xf32>
    %cst_7 = arith.constant 0.000000e+00 : f32
    %9 = vector.broadcast %cst_7 : f32 to vector<6x128xf32>
    %10 = tpu.concatenate %5, %8, %9 in 0 : vector<1x128xf32>, vector<1x128xf32>, vector<6x128xf32> -> vector<8x128xf32>
    %c0_8 = arith.constant 0 : index
    %c0_9 = arith.constant 0 : index
    %11 = vector.load %arg4[%c0_8, %c0_9] : memref<8x128xf32, #tpu.memory_space<vmem>>, vector<8x128xf32>
    tpu.vector_store %arg4[%c0_8, %c0_9], %10 {strides = array<i32>} : memref<8x128xf32, #tpu.memory_space<vmem>>, vector<8x128xf32>,
    return
  }
  func.func @transform_0(%arg0: i32) -> (i32, i32) {
    %c0_i32 = arith.constant 0 : i32
    %c0_i32_0 = arith.constant 0 : i32
    return %arg0, %c0_i32 : i32, i32
  }
  func.func @transform_1(%arg0: i32) -> (i32, i32) {
    %c0_i32 = arith.constant 0 : i32
    %c0_i32_0 = arith.constant 0 : i32
    %c0_i32_1 = arith.constant 0 : i32
    return %c0_i32, %c0_i32_0 : i32, i32
  }
  func.func @transform_2(%arg0: i32) -> (i32, i32) {
    %c0_i32 = arith.constant 0 : i32
    %c0_i32_0 = arith.constant 0 : i32
    return %arg0, %c0_i32 : i32, i32
  }
  func.func @transform_3(%arg0: i32) -> (i32, i32) {
    %c0_i32 = arith.constant 0 : i32
    %c0_i32_0 = arith.constant 0 : i32
    return %arg0, %c0_i32 : i32, i32
  }
}

module attributes {stable_mosaic.version = 11 : i64} {
  func.func @_affine_leaky_kernel(%arg0: i32, %arg1: memref<32x128xf32, #tpu.memory_space<vmem>>, %arg2: memref<1x128xf32, #tpu.memory_space<vmem>>, %arg3: memref<1x128xf32, #tpu.memory_space<vmem>>, %arg4: memref<32x128xf32, #tpu.memory_space<vmem>>) attributes {dimension_semantics = [#tpu.dimension_semantics<parallel>], iteration_bounds = array<i64: 1>, scalar_prefetch = 0 : i64, scratch_operands = 0 : i64, tpu.core_type = #tpu.core_type<tc>, window_params = [{transform_indices = @transform_0, window_bounds = array<i64: 32, 128>}, {pipeline_mode = #tpu.pipeline_mode<synchronous>, transform_indices = @transform_1, window_bounds = array<i64: 1, 128>}, {pipeline_mode = #tpu.pipeline_mode<synchronous>, transform_indices = @transform_2, window_bounds = array<i64: 1, 128>}, {transform_indices = @transform_3, window_bounds = array<i64: 32, 128>}]} {
    %c0 = arith.constant 0 : index
    %c0_0 = arith.constant 0 : index
    %0 = vector.load %arg1[%c0, %c0_0] : memref<32x128xf32, #tpu.memory_space<vmem>>, vector<32x128xf32>
    %c0_1 = arith.constant 0 : index
    %c0_2 = arith.constant 0 : index
    %1 = vector.load %arg2[%c0_1, %c0_2] : memref<1x128xf32, #tpu.memory_space<vmem>>, vector<1x128xf32>
    %2 = vector.broadcast %1 : vector<1x128xf32> to vector<32x128xf32>
    %3 = arith.mulf %0, %2 : vector<32x128xf32>
    %c0_3 = arith.constant 0 : index
    %c0_4 = arith.constant 0 : index
    %4 = vector.load %arg3[%c0_3, %c0_4] : memref<1x128xf32, #tpu.memory_space<vmem>>, vector<1x128xf32>
    %5 = vector.broadcast %4 : vector<1x128xf32> to vector<32x128xf32>
    %6 = arith.addf %3, %5 : vector<32x128xf32>
    %cst = arith.constant 0.000000e+00 : f32
    %7 = vector.broadcast %cst : f32 to vector<32x128xf32>
    %8 = arith.cmpf ogt, %6, %7 : vector<32x128xf32>
    %cst_5 = arith.constant 2.000000e-01 : f32
    %9 = vector.broadcast %cst_5 : f32 to vector<32x128xf32>
    %10 = arith.mulf %9, %6 : vector<32x128xf32>
    %11 = arith.select %8, %6, %10 : vector<32x128xi1>, vector<32x128xf32>
    %c0_6 = arith.constant 0 : index
    %c0_7 = arith.constant 0 : index
    %12 = vector.load %arg4[%c0_6, %c0_7] : memref<32x128xf32, #tpu.memory_space<vmem>>, vector<32x128xf32>
    tpu.vector_store %arg4[%c0_6, %c0_7], %11 {strides = array<i32>} : memref<32x128xf32, #tpu.memory_space<vmem>>, vector<32x128xf32>,
    return
  }
  func.func @transform_0(%arg0: i32) -> (i32, i32) {
    %c0_i32 = arith.constant 0 : i32
    %c0_i32_0 = arith.constant 0 : i32
    return %arg0, %c0_i32 : i32, i32
  }
  func.func @transform_1(%arg0: i32) -> (i32, i32) {
    %c0_i32 = arith.constant 0 : i32
    %c0_i32_0 = arith.constant 0 : i32
    %c0_i32_1 = arith.constant 0 : i32
    return %c0_i32, %c0_i32_0 : i32, i32
  }
  func.func @transform_2(%arg0: i32) -> (i32, i32) {
    %c0_i32 = arith.constant 0 : i32
    %c0_i32_0 = arith.constant 0 : i32
    %c0_i32_1 = arith.constant 0 : i32
    return %c0_i32, %c0_i32_0 : i32, i32
  }
  func.func @transform_3(%arg0: i32) -> (i32, i32) {
    %c0_i32 = arith.constant 0 : i32
    %c0_i32_0 = arith.constant 0 : i32
    return %arg0, %c0_i32 : i32, i32
  }
}

module attributes {stable_mosaic.version = 11 : i64} {
  func.func @_gemm_stats_kernel(%arg0: i32, %arg1: memref<8x256xbf16, #tpu.memory_space<vmem>>, %arg2: memref<256x128xbf16, #tpu.memory_space<vmem>>, %arg3: memref<8x128xf32, #tpu.memory_space<vmem>>, %arg4: memref<8x128xf32, #tpu.memory_space<vmem>>) attributes {dimension_semantics = [#tpu.dimension_semantics<parallel>], iteration_bounds = array<i64: 1>, scalar_prefetch = 0 : i64, scratch_operands = 0 : i64, tpu.core_type = #tpu.core_type<tc>, window_params = [{transform_indices = @transform_0, window_bounds = array<i64: 8, 256>}, {pipeline_mode = #tpu.pipeline_mode<synchronous>, transform_indices = @transform_1, window_bounds = array<i64: 256, 128>}, {transform_indices = @transform_2, window_bounds = array<i64: 8, 128>}, {transform_indices = @transform_3, window_bounds = array<i64: 8, 128>}]} {
    %c0 = arith.constant 0 : index
    %c0_0 = arith.constant 0 : index
    %0 = vector.load %arg1[%c0, %c0_0] : memref<8x256xbf16, #tpu.memory_space<vmem>>, vector<8x256xbf16>
    %c0_1 = arith.constant 0 : index
    %c0_2 = arith.constant 0 : index
    %1 = vector.load %arg2[%c0_1, %c0_2] : memref<256x128xbf16, #tpu.memory_space<vmem>>, vector<256x128xbf16>
    %cst = arith.constant dense<0.000000e+00> : vector<8x128xf32>
    %2 = tpu.matmul %0, %1, %cst {dimension_numbers = #tpu.dot_dimension_numbers<[1], [0], [0], [1], [0, 0, 1, 1], [], []>} : vector<8x256xbf16>, vector<256x128xbf16>, vector<8x128xf32> -> vector<8x128xf32>
    %c0_3 = arith.constant 0 : index
    %c0_4 = arith.constant 0 : index
    %3 = vector.load %arg3[%c0_3, %c0_4] : memref<8x128xf32, #tpu.memory_space<vmem>>, vector<8x128xf32>
    tpu.vector_store %arg3[%c0_3, %c0_4], %2 {strides = array<i32>} : memref<8x128xf32, #tpu.memory_space<vmem>>, vector<8x128xf32>,
    %cst_5 = arith.constant dense<0.000000e+00> : vector<128xf32>
    %4 = vector.multi_reduction <add>, %2, %cst_5 [0] : vector<8x128xf32> to vector<128xf32>
    %5 = vector.shape_cast %4 : vector<128xf32> to vector<1x128xf32>
    %6 = arith.mulf %2, %2 : vector<8x128xf32>
    %cst_6 = arith.constant dense<0.000000e+00> : vector<128xf32>
    %7 = vector.multi_reduction <add>, %6, %cst_6 [0] : vector<8x128xf32> to vector<128xf32>
    %8 = vector.shape_cast %7 : vector<128xf32> to vector<1x128xf32>
    %cst_7 = arith.constant 0.000000e+00 : f32
    %9 = vector.broadcast %cst_7 : f32 to vector<6x128xf32>
    %10 = tpu.concatenate %5, %8, %9 in 0 : vector<1x128xf32>, vector<1x128xf32>, vector<6x128xf32> -> vector<8x128xf32>
    %c0_8 = arith.constant 0 : index
    %c0_9 = arith.constant 0 : index
    %11 = vector.load %arg4[%c0_8, %c0_9] : memref<8x128xf32, #tpu.memory_space<vmem>>, vector<8x128xf32>
    tpu.vector_store %arg4[%c0_8, %c0_9], %10 {strides = array<i32>} : memref<8x128xf32, #tpu.memory_space<vmem>>, vector<8x128xf32>,
    return
  }
  func.func @transform_0(%arg0: i32) -> (i32, i32) {
    %c0_i32 = arith.constant 0 : i32
    %c0_i32_0 = arith.constant 0 : i32
    return %arg0, %c0_i32 : i32, i32
  }
  func.func @transform_1(%arg0: i32) -> (i32, i32) {
    %c0_i32 = arith.constant 0 : i32
    %c0_i32_0 = arith.constant 0 : i32
    %c0_i32_1 = arith.constant 0 : i32
    return %c0_i32, %c0_i32_0 : i32, i32
  }
  func.func @transform_2(%arg0: i32) -> (i32, i32) {
    %c0_i32 = arith.constant 0 : i32
    %c0_i32_0 = arith.constant 0 : i32
    return %arg0, %c0_i32 : i32, i32
  }
  func.func @transform_3(%arg0: i32) -> (i32, i32) {
    %c0_i32 = arith.constant 0 : i32
    %c0_i32_0 = arith.constant 0 : i32
    return %arg0, %c0_i32 : i32, i32
  }
}

module attributes {stable_mosaic.version = 11 : i64} {
  func.func @_affine_leaky_kernel(%arg0: i32, %arg1: memref<8x128xf32, #tpu.memory_space<vmem>>, %arg2: memref<1x128xf32, #tpu.memory_space<vmem>>, %arg3: memref<1x128xf32, #tpu.memory_space<vmem>>, %arg4: memref<8x128xf32, #tpu.memory_space<vmem>>) attributes {dimension_semantics = [#tpu.dimension_semantics<parallel>], iteration_bounds = array<i64: 1>, scalar_prefetch = 0 : i64, scratch_operands = 0 : i64, tpu.core_type = #tpu.core_type<tc>, window_params = [{transform_indices = @transform_0, window_bounds = array<i64: 8, 128>}, {pipeline_mode = #tpu.pipeline_mode<synchronous>, transform_indices = @transform_1, window_bounds = array<i64: 1, 128>}, {pipeline_mode = #tpu.pipeline_mode<synchronous>, transform_indices = @transform_2, window_bounds = array<i64: 1, 128>}, {transform_indices = @transform_3, window_bounds = array<i64: 8, 128>}]} {
    %c0 = arith.constant 0 : index
    %c0_0 = arith.constant 0 : index
    %0 = vector.load %arg1[%c0, %c0_0] : memref<8x128xf32, #tpu.memory_space<vmem>>, vector<8x128xf32>
    %c0_1 = arith.constant 0 : index
    %c0_2 = arith.constant 0 : index
    %1 = vector.load %arg2[%c0_1, %c0_2] : memref<1x128xf32, #tpu.memory_space<vmem>>, vector<1x128xf32>
    %2 = vector.broadcast %1 : vector<1x128xf32> to vector<8x128xf32>
    %3 = arith.mulf %0, %2 : vector<8x128xf32>
    %c0_3 = arith.constant 0 : index
    %c0_4 = arith.constant 0 : index
    %4 = vector.load %arg3[%c0_3, %c0_4] : memref<1x128xf32, #tpu.memory_space<vmem>>, vector<1x128xf32>
    %5 = vector.broadcast %4 : vector<1x128xf32> to vector<8x128xf32>
    %6 = arith.addf %3, %5 : vector<8x128xf32>
    %cst = arith.constant 0.000000e+00 : f32
    %7 = vector.broadcast %cst : f32 to vector<8x128xf32>
    %8 = arith.cmpf ogt, %6, %7 : vector<8x128xf32>
    %cst_5 = arith.constant 2.000000e-01 : f32
    %9 = vector.broadcast %cst_5 : f32 to vector<8x128xf32>
    %10 = arith.mulf %9, %6 : vector<8x128xf32>
    %11 = arith.select %8, %6, %10 : vector<8x128xi1>, vector<8x128xf32>
    %c0_6 = arith.constant 0 : index
    %c0_7 = arith.constant 0 : index
    %12 = vector.load %arg4[%c0_6, %c0_7] : memref<8x128xf32, #tpu.memory_space<vmem>>, vector<8x128xf32>
    tpu.vector_store %arg4[%c0_6, %c0_7], %11 {strides = array<i32>} : memref<8x128xf32, #tpu.memory_space<vmem>>, vector<8x128xf32>,
    return
  }
  func.func @transform_0(%arg0: i32) -> (i32, i32) {
    %c0_i32 = arith.constant 0 : i32
    %c0_i32_0 = arith.constant 0 : i32
    return %arg0, %c0_i32 : i32, i32
  }
  func.func @transform_1(%arg0: i32) -> (i32, i32) {
    %c0_i32 = arith.constant 0 : i32
    %c0_i32_0 = arith.constant 0 : i32
    %c0_i32_1 = arith.constant 0 : i32
    return %c0_i32, %c0_i32_0 : i32, i32
  }
  func.func @transform_2(%arg0: i32) -> (i32, i32) {
    %c0_i32 = arith.constant 0 : i32
    %c0_i32_0 = arith.constant 0 : i32
    %c0_i32_1 = arith.constant 0 : i32
    return %c0_i32, %c0_i32_0 : i32, i32
  }
  func.func @transform_3(%arg0: i32) -> (i32, i32) {
    %c0_i32 = arith.constant 0 : i32
    %c0_i32_0 = arith.constant 0 : i32
    return %arg0, %c0_i32 : i32, i32
  }
}

module attributes {stable_mosaic.version = 11 : i64} {
  func.func @_gemm_bias_act_kernel(%arg0: i32, %arg1: memref<8x512xbf16, #tpu.memory_space<vmem>>, %arg2: memref<512x128xbf16, #tpu.memory_space<vmem>>, %arg3: memref<1x128xf32, #tpu.memory_space<vmem>>, %arg4: memref<8x128xf32, #tpu.memory_space<vmem>>) attributes {dimension_semantics = [#tpu.dimension_semantics<parallel>], iteration_bounds = array<i64: 1>, scalar_prefetch = 0 : i64, scratch_operands = 0 : i64, tpu.core_type = #tpu.core_type<tc>, window_params = [{transform_indices = @transform_0, window_bounds = array<i64: 8, 512>}, {pipeline_mode = #tpu.pipeline_mode<synchronous>, transform_indices = @transform_1, window_bounds = array<i64: 512, 128>}, {pipeline_mode = #tpu.pipeline_mode<synchronous>, transform_indices = @transform_2, window_bounds = array<i64: 1, 128>}, {transform_indices = @transform_3, window_bounds = array<i64: 8, 128>}]} {
    %c0 = arith.constant 0 : index
    %c0_0 = arith.constant 0 : index
    %0 = vector.load %arg1[%c0, %c0_0] : memref<8x512xbf16, #tpu.memory_space<vmem>>, vector<8x512xbf16>
    %c0_1 = arith.constant 0 : index
    %c0_2 = arith.constant 0 : index
    %1 = vector.load %arg2[%c0_1, %c0_2] : memref<512x128xbf16, #tpu.memory_space<vmem>>, vector<512x128xbf16>
    %cst = arith.constant dense<0.000000e+00> : vector<8x128xf32>
    %2 = tpu.matmul %0, %1, %cst {dimension_numbers = #tpu.dot_dimension_numbers<[1], [0], [0], [1], [0, 0, 1, 1], [], []>} : vector<8x512xbf16>, vector<512x128xbf16>, vector<8x128xf32> -> vector<8x128xf32>
    %c0_3 = arith.constant 0 : index
    %c0_4 = arith.constant 0 : index
    %3 = vector.load %arg3[%c0_3, %c0_4] : memref<1x128xf32, #tpu.memory_space<vmem>>, vector<1x128xf32>
    %4 = vector.broadcast %3 : vector<1x128xf32> to vector<8x128xf32>
    %5 = arith.addf %2, %4 : vector<8x128xf32>
    %cst_5 = arith.constant 0.000000e+00 : f32
    %6 = vector.broadcast %cst_5 : f32 to vector<8x128xf32>
    %7 = arith.subf %6, %5 : vector<8x128xf32>
    %8 = math.exp %7 : vector<8x128xf32>
    %cst_6 = arith.constant 1.000000e+00 : f32
    %9 = vector.broadcast %cst_6 : f32 to vector<8x128xf32>
    %10 = arith.addf %9, %8 : vector<8x128xf32>
    %11 = tpu.reciprocal %10 {approx = true} : vector<8x128xf32> -> vector<8x128xf32>
    %c0_7 = arith.constant 0 : index
    %c0_8 = arith.constant 0 : index
    %12 = vector.load %arg4[%c0_7, %c0_8] : memref<8x128xf32, #tpu.memory_space<vmem>>, vector<8x128xf32>
    tpu.vector_store %arg4[%c0_7, %c0_8], %11 {strides = array<i32>} : memref<8x128xf32, #tpu.memory_space<vmem>>, vector<8x128xf32>,
    return
  }
  func.func @transform_0(%arg0: i32) -> (i32, i32) {
    %c0_i32 = arith.constant 0 : i32
    %c0_i32_0 = arith.constant 0 : i32
    return %arg0, %c0_i32 : i32, i32
  }
  func.func @transform_1(%arg0: i32) -> (i32, i32) {
    %c0_i32 = arith.constant 0 : i32
    %c0_i32_0 = arith.constant 0 : i32
    %c0_i32_1 = arith.constant 0 : i32
    return %c0_i32, %c0_i32_0 : i32, i32
  }
  func.func @transform_2(%arg0: i32) -> (i32, i32) {
    %c0_i32 = arith.constant 0 : i32
    %c0_i32_0 = arith.constant 0 : i32
    %c0_i32_1 = arith.constant 0 : i32
    return %c0_i32, %c0_i32_0 : i32, i32
  }
  func.func @transform_3(%arg0: i32) -> (i32, i32) {
    %c0_i32 = arith.constant 0 : i32
    %c0_i32_0 = arith.constant 0 : i32
    return %arg0, %c0_i32 : i32, i32
  }
}

</mosaic_0001>

<llo_original>
// kernel: discriminator_forward.6
$region0: #{discriminator_forward.6}
  #allocation0 [shape = 'u32[]', space=smem, size = 0x4, offset = 0x4, fixed_abs, tag = 'smem constant byte address 0x4 - core index']
  #allocation1 [shape = 'u32[72,128]{1,0:T(1,128)}', space=vmem, size = 0x9000, scoped, tag = 'internal scratch']
  %s0 = inlined_call_operand.vmem [shape: bf16[128,128], index: 0, kind: input, shape index: {}]
  %s1 = inlined_call_operand.vmem [shape: bf16[128,128], index: 1, kind: input, shape index: {}]
  %s2 = inlined_call_operand.vmem [shape: f32[1,128], index: 2, kind: input, shape index: {}]
  %s3 = inlined_call_operand.vmem [shape: f32[128,128], index: 3, kind: output, shape index: {}]
  %s4 = sld [smem:[#allocation0]]
  $region22: #{discriminator_forward.6} parent=0
    _
  %s6 = ssub.s32 1, %s4
  %s7 = scalar_select 0, %s6, %s4
  // Predicated region
  $region2: #{discriminator_forward.6} parent=0 // pred_check
    _
  $region3: #{discriminator_forward.6} parent=0 // pred_check_branch
    %9 = sbr.rel (0) target = $region5
  $region4: #{discriminator_forward.6} parent=0 // pred_region
    _
  $region5: #{discriminator_forward.6} parent=0 // pred_fallthru
    _
  // Predicated region
  $region6: #{discriminator_forward.6} parent=0 // pred_check
    _
  $region7: #{discriminator_forward.6} parent=0 // pred_check_branch
    %11 = sbr.rel (0) target = $region9
  $region8: #{discriminator_forward.6} parent=0 // pred_region
    _
  $region9: #{discriminator_forward.6} parent=0 // pred_fallthru
    _
  // Predicated region
  $region10: #{discriminator_forward.6} parent=0 // pred_check
    _
  $region11: #{discriminator_forward.6} parent=0 // pred_check_branch
    %13 = sbr.rel (0) target = $region13
  $region12: #{discriminator_forward.6} parent=0 // pred_region
    _
  $region13: #{discriminator_forward.6} parent=0 // pred_fallthru
    _
  %v14 = vld [vmem:[%s0] sm:$0xf]
  %v15 = vld [vmem:[%s0 + $0x4] sm:$0xf]
  %v16 = vld [vmem:[%s0 + $0x8] sm:$0xf]
  %v17 = vld [vmem:[%s0 + $0xc] sm:$0xf]
  %v18 = vld [vmem:[%s0 + $0x10] sm:$0xf]
  %v19 = vld [vmem:[%s0 + $0x14] sm:$0xf]
  %v20 = vld [vmem:[%s0 + $0x18] sm:$0xf]
  %v21 = vld [vmem:[%s0 + $0x1c] sm:$0xf]
  %v22 = vld [vmem:[%s0 + $0x20] sm:$0xf]
  %v23 = vld [vmem:[%s0 + $0x24] sm:$0xf]
  %v24 = vld [vmem:[%s0 + $0x28] sm:$0xf]
  %v25 = vld [vmem:[%s0 + $0x2c] sm:$0xf]
  %v26 = vld [vmem:[%s0 + $0x30] sm:$0xf]
  %v27 = vld [vmem:[%s0 + $0x34] sm:$0xf]
  %v28 = vld [vmem:[%s0 + $0x38] sm:$0xf]
  %v29 = vld [vmem:[%s0 + $0x3c] sm:$0xf]
  %v30 = vld [vmem:[%s1] sm:$0xf]
  %v31 = vld [vmem:[%s1 + $0x4] sm:$0xf]
  %v32 = vld [vmem:[%s1 + $0x8] sm:$0xf]
  %v33 = vld [vmem:[%s1 + $0xc] sm:$0xf]
  %v34 = vld [vmem:[%s1 + $0x10] sm:$0xf]
  %v35 = vld [vmem:[%s1 + $0x14] sm:$0xf]
  %v36 = vld [vmem:[%s1 + $0x18] sm:$0xf]
  %v37 = vld [vmem:[%s1 + $0x1c] sm:$0xf]
  %v38 = vld [vmem:[%s1 + $0x20] sm:$0xf]
  %v39 = vld [vmem:[%s1 + $0x24] sm:$0xf]
  %v40 = vld [vmem:[%s1 + $0x28] sm:$0xf]
  %v41 = vld [vmem:[%s1 + $0x2c] sm:$0xf]
  %v42 = vld [vmem:[%s1 + $0x30] sm:$0xf]
  %v43 = vld [vmem:[%s1 + $0x34] sm:$0xf]
  %v44 = vld [vmem:[%s1 + $0x38] sm:$0xf]
  %v45 = vld [vmem:[%s1 + $0x3c] sm:$0xf]
  %v46 = vld [vmem:[%s2] sm:$0x1]
  %v48 = vperm.slane %v46, 0
  %v66 = vunpack.c.l.b16 %v14
  %v67 = vunpack.c.l.b16 %v15
  %v68 = vunpack.c.l.b16 %v16
  %v69 = vunpack.c.l.b16 %v17
  %v70 = vunpack.c.l.b16 %v18
  %v71 = vunpack.c.l.b16 %v19
  %v72 = vunpack.c.l.b16 %v20
  %v73 = vunpack.c.l.b16 %v21
  %v74 = vunpack.c.l.b16 %v22
  %v75 = vunpack.c.l.b16 %v23
  %v76 = vunpack.c.l.b16 %v24
  %v77 = vunpack.c.l.b16 %v25
  %v78 = vunpack.c.l.b16 %v26
  %v79 = vunpack.c.l.b16 %v27
  %v80 = vunpack.c.l.b16 %v28
  %v81 = vunpack.c.l.b16 %v29
  %v82 = vpack.c.b16 %v67, %v66
  %v83 = vpack.c.b16 %v69, %v68
  %v84 = vpack.c.b16 %v71, %v70
  %v85 = vpack.c.b16 %v73, %v72
  %v86 = vpack.c.b16 %v75, %v74
  %v87 = vpack.c.b16 %v77, %v76
  %v88 = vpack.c.b16 %v79, %v78
  %v89 = vpack.c.b16 %v81, %v80
  %v114 = vunpack.c.l.b16 %v30
  %v115 = vunpack.c.l.b16 %v31
  %v116 = vunpack.c.l.b16 %v32
  %v117 = vunpack.c.l.b16 %v33
  %v118 = vunpack.c.l.b16 %v34
  %v119 = vunpack.c.l.b16 %v35
  %v120 = vunpack.c.l.b16 %v36
  %v121 = vunpack.c.l.b16 %v37
  %v122 = vunpack.c.l.b16 %v38
  %v123 = vunpack.c.l.b16 %v39
  %v124 = vunpack.c.l.b16 %v40
  %v125 = vunpack.c.l.b16 %v41
  %v126 = vunpack.c.l.b16 %v42
  %v127 = vunpack.c.l.b16 %v43
  %v128 = vunpack.c.l.b16 %v44
  %v129 = vunpack.c.l.b16 %v45
  %v130 = vpack.c.b16 %v115, %v114
  %v131 = vpack.c.b16 %v117, %v116
  %v132 = vpack.c.b16 %v119, %v118
  %v133 = vpack.c.b16 %v121, %v120
  %v134 = vpack.c.b16 %v123, %v122
  %v135 = vpack.c.b16 %v125, %v124
  %v136 = vpack.c.b16 %v127, %v126
  %v137 = vpack.c.b16 %v129, %v128
  %146 = vmatpush.bf16.msra.mxu0 %v137
  %147 = vmatpush.bf16.msra.mxu0 %v136
  %148 = vmatpush.bf16.msra.mxu0 %v135
  %149 = vmatpush.bf16.msra.mxu0 %v134
  %150 = vmatpush.bf16.msra.mxu0 %v133
  %151 = vmatpush.bf16.msra.mxu0 %v132
  %152 = vmatpush.bf16.msra.mxu0 %v131
  %153 = vmatpush.bf16.msra.mxu0 %v130
  %154 = vmatmul.bf16.gmra.mxu0 %v82
  %v155 = vpop.f32.mrf.mxu0
  %v156 = vadd.f32 %v48, %v155
  %v157 = vpop.f32.mrf.mxu0
  %v158 = vadd.f32 %v48, %v157
  %159 = vmatmul.bf16.gmra.mxu0 %v83
  %v160 = vpop.f32.mrf.mxu0
  %v161 = vadd.f32 %v48, %v160
  %v162 = vpop.f32.mrf.mxu0
  %v163 = vadd.f32 %v48, %v162
  %164 = vmatmul.bf16.gmra.mxu0 %v84
  %v165 = vpop.f32.mrf.mxu0
  %v166 = vadd.f32 %v48, %v165
  %v167 = vpop.f32.mrf.mxu0
  %v168 = vadd.f32 %v48, %v167
  %169 = vmatmul.bf16.gmra.mxu0 %v85
  %v170 = vpop.f32.mrf.mxu0
  %v171 = vadd.f32 %v48, %v170
  %v172 = vpop.f32.mrf.mxu0
  %v173 = vadd.f32 %v48, %v172
  %174 = vmatmul.bf16.gmra.mxu0 %v86
  %v175 = vpop.f32.mrf.mxu0
  %v176 = vadd.f32 %v48, %v175
  %v177 = vpop.f32.mrf.mxu0
  %v178 = vadd.f32 %v48, %v177
  %179 = vmatmul.bf16.gmra.mxu0 %v87
  %v180 = vpop.f32.mrf.mxu0
  %v181 = vadd.f32 %v48, %v180
  %v182 = vpop.f32.mrf.mxu0
  %v183 = vadd.f32 %v48, %v182
  %184 = vmatmul.bf16.gmra.mxu0 %v88
  %v185 = vpop.f32.mrf.mxu0
  %v186 = vadd.f32 %v48, %v185
  %v187 = vpop.f32.mrf.mxu0
  %v188 = vadd.f32 %v48, %v187
  %189 = vmatmul.bf16.gmra.mxu0 %v89
  %v190 = vpop.f32.mrf.mxu0
  %v191 = vadd.f32 %v48, %v190
  %v192 = vpop.f32.mrf.mxu0
  %v193 = vadd.f32 %v48, %v192
  %194 = vdwg.mxu0
  %vm195 = vcmp.gt.f32.partialorder %v156, 0.0
  %vm196 = vcmp.gt.f32.partialorder %v158, 0.0
  %vm197 = vcmp.gt.f32.partialorder %v161, 0.0
  %vm198 = vcmp.gt.f32.partialorder %v163, 0.0
  %vm199 = vcmp.gt.f32.partialorder %v166, 0.0
  %vm200 = vcmp.gt.f32.partialorder %v168, 0.0
  %vm201 = vcmp.gt.f32.partialorder %v171, 0.0
  %vm202 = vcmp.gt.f32.partialorder %v173, 0.0
  %vm203 = vcmp.gt.f32.partialorder %v176, 0.0
  %vm204 = vcmp.gt.f32.partialorder %v178, 0.0
  %vm205 = vcmp.gt.f32.partialorder %v181, 0.0
  %vm206 = vcmp.gt.f32.partialorder %v183, 0.0
  %vm207 = vcmp.gt.f32.partialorder %v186, 0.0
  %vm208 = vcmp.gt.f32.partialorder %v188, 0.0
  %vm209 = vcmp.gt.f32.partialorder %v191, 0.0
  %vm210 = vcmp.gt.f32.partialorder %v193, 0.0
  %v211 = vmul.f32 %v156, 0.2
  %v212 = vmul.f32 %v158, 0.2
  %v213 = vmul.f32 %v161, 0.2
  %v214 = vmul.f32 %v163, 0.2
  %v215 = vmul.f32 %v166, 0.2
  %v216 = vmul.f32 %v168, 0.2
  %v217 = vmul.f32 %v171, 0.2
  %v218 = vmul.f32 %v173, 0.2
  %v219 = vmul.f32 %v176, 0.2
  %v220 = vmul.f32 %v178, 0.2
  %v221 = vmul.f32 %v181, 0.2
  %v222 = vmul.f32 %v183, 0.2
  %v223 = vmul.f32 %v186, 0.2
  %v224 = vmul.f32 %v188, 0.2
  %v225 = vmul.f32 %v191, 0.2
  %v226 = vmul.f32 %v193, 0.2
  %v227 = vsel %vm195, %v156, %v211
  %v228 = vsel %vm196, %v158, %v212
  %v229 = vsel %vm197, %v161, %v213
  %v230 = vsel %vm198, %v163, %v214
  %v231 = vsel %vm199, %v166, %v215
  %v232 = vsel %vm200, %v168, %v216
  %v233 = vsel %vm201, %v171, %v217
  %v234 = vsel %vm202, %v173, %v218
  %v235 = vsel %vm203, %v176, %v219
  %v236 = vsel %vm204, %v178, %v220
  %v237 = vsel %vm205, %v181, %v221
  %v238 = vsel %vm206, %v183, %v222
  %v239 = vsel %vm207, %v186, %v223
  %v240 = vsel %vm208, %v188, %v224
  %v241 = vsel %vm209, %v191, %v225
  %v242 = vsel %vm210, %v193, %v226
  %243 = vst [vmem:[%s3] sm:$0xff] %v227
  %244 = vst [vmem:[%s3 + $0x8] sm:$0xff] %v228
  %245 = vst [vmem:[%s3 + $0x10] sm:$0xff] %v229
  %246 = vst [vmem:[%s3 + $0x18] sm:$0xff] %v230
  %247 = vst [vmem:[%s3 + $0x20] sm:$0xff] %v231
  %248 = vst [vmem:[%s3 + $0x28] sm:$0xff] %v232
  %249 = vst [vmem:[%s3 + $0x30] sm:$0xff] %v233
  %250 = vst [vmem:[%s3 + $0x38] sm:$0xff] %v234
  %251 = vst [vmem:[%s3 + $0x40] sm:$0xff] %v235
  %252 = vst [vmem:[%s3 + $0x48] sm:$0xff] %v236
  %253 = vst [vmem:[%s3 + $0x50] sm:$0xff] %v237
  %254 = vst [vmem:[%s3 + $0x58] sm:$0xff] %v238
  %255 = vst [vmem:[%s3 + $0x60] sm:$0xff] %v239
  %256 = vst [vmem:[%s3 + $0x68] sm:$0xff] %v240
  %257 = vst [vmem:[%s3 + $0x70] sm:$0xff] %v241
  %258 = vst [vmem:[%s3 + $0x78] sm:$0xff] %v242
  // Predicated region
  $region14: #{discriminator_forward.6} parent=0 // pred_check
    _
  $region15: #{discriminator_forward.6} parent=0 // pred_check_branch
    %260 = sbr.rel (0) target = $region17
  $region16: #{discriminator_forward.6} parent=0 // pred_region
    _
  $region17: #{discriminator_forward.6} parent=0 // pred_fallthru
    _
  // Predicated region
  $region18: #{discriminator_forward.6} parent=0 // pred_check
    _
  $region19: #{discriminator_forward.6} parent=0 // pred_check_branch
    %262 = sbr.rel (0) target = $region21
  $region20: #{discriminator_forward.6} parent=0 // pred_region
    _
  $region21: #{discriminator_forward.6} parent=0 // pred_fallthru
    _

// kernel: discriminator_forward.7
$region0: #{discriminator_forward.7}
  #allocation0 [shape = 'u32[]', space=smem, size = 0x4, offset = 0x4, fixed_abs, tag = 'smem constant byte address 0x4 - core index']
  #allocation1 [shape = 'u32[72,128]{1,0:T(1,128)}', space=vmem, size = 0x9000, scoped, tag = 'internal scratch']
  %s0 = inlined_call_operand.vmem [shape: bf16[32,128], index: 0, kind: input, shape index: {}]
  %s1 = inlined_call_operand.vmem [shape: bf16[128,128], index: 1, kind: input, shape index: {}]
  %s2 = inlined_call_operand.vmem [shape: f32[32,128], index: 2, kind: output, shape index: {0}]
  %s3 = inlined_call_operand.vmem [shape: f32[8,128], index: 3, kind: output, shape index: {1}]
  %4 = xla_tuple %s2, %s3
  %s5 = sld [smem:[#allocation0]]
  $region26: #{discriminator_forward.7} parent=0
    _
  %s7 = ssub.s32 1, %s5
  %s8 = scalar_select 0, %s7, %s5
  // Predicated region
  $region2: #{discriminator_forward.7} parent=0 // pred_check
    _
  $region3: #{discriminator_forward.7} parent=0 // pred_check_branch
    %10 = sbr.rel (0) target = $region5
  $region4: #{discriminator_forward.7} parent=0 // pred_region
    _
  $region5: #{discriminator_forward.7} parent=0 // pred_fallthru
    _
  // Predicated region
  $region6: #{discriminator_forward.7} parent=0 // pred_check
    _
  $region7: #{discriminator_forward.7} parent=0 // pred_check_branch
    %12 = sbr.rel (0) target = $region9
  $region8: #{discriminator_forward.7} parent=0 // pred_region
    _
  $region9: #{discriminator_forward.7} parent=0 // pred_fallthru
    _
  %v13 = vld [vmem:[%s0] sm:$0xf]
  %v14 = vld [vmem:[%s0 + $0x4] sm:$0xf]
  %v15 = vld [vmem:[%s0 + $0x8] sm:$0xf]
  %v16 = vld [vmem:[%s0 + $0xc] sm:$0xf]
  %v17 = vld [vmem:[%s1] sm:$0xf]
  %v18 = vld [vmem:[%s1 + $0x4] sm:$0xf]
  %v19 = vld [vmem:[%s1 + $0x8] sm:$0xf]
  %v20 = vld [vmem:[%s1 + $0xc] sm:$0xf]
  %v21 = vld [vmem:[%s1 + $0x10] sm:$0xf]
  %v22 = vld [vmem:[%s1 + $0x14] sm:$0xf]
  %v23 = vld [vmem:[%s1 + $0x18] sm:$0xf]
  %v24 = vld [vmem:[%s1 + $0x1c] sm:$0xf]
  %v25 = vld [vmem:[%s1 + $0x20] sm:$0xf]
  %v26 = vld [vmem:[%s1 + $0x24] sm:$0xf]
  %v27 = vld [vmem:[%s1 + $0x28] sm:$0xf]
  %v28 = vld [vmem:[%s1 + $0x2c] sm:$0xf]
  %v29 = vld [vmem:[%s1 + $0x30] sm:$0xf]
  %v30 = vld [vmem:[%s1 + $0x34] sm:$0xf]
  %v31 = vld [vmem:[%s1 + $0x38] sm:$0xf]
  %v32 = vld [vmem:[%s1 + $0x3c] sm:$0xf]
  %v37 = vunpack.c.l.b16 %v13
  %v38 = vunpack.c.l.b16 %v14
  %v39 = vunpack.c.l.b16 %v15
  %v40 = vunpack.c.l.b16 %v16
  %v41 = vpack.c.b16 %v38, %v37
  %v42 = vpack.c.b16 %v40, %v39
  %v61 = vunpack.c.l.b16 %v17
  %v62 = vunpack.c.l.b16 %v18
  %v63 = vunpack.c.l.b16 %v19
  %v64 = vunpack.c.l.b16 %v20
  %v65 = vunpack.c.l.b16 %v21
  %v66 = vunpack.c.l.b16 %v22
  %v67 = vunpack.c.l.b16 %v23
  %v68 = vunpack.c.l.b16 %v24
  %v69 = vunpack.c.l.b16 %v25
  %v70 = vunpack.c.l.b16 %v26
  %v71 = vunpack.c.l.b16 %v27
  %v72 = vunpack.c.l.b16 %v28
  %v73 = vunpack.c.l.b16 %v29
  %v74 = vunpack.c.l.b16 %v30
  %v75 = vunpack.c.l.b16 %v31
  %v76 = vunpack.c.l.b16 %v32
  %v77 = vpack.c.b16 %v62, %v61
  %v78 = vpack.c.b16 %v64, %v63
  %v79 = vpack.c.b16 %v66, %v65
  %v80 = vpack.c.b16 %v68, %v67
  %v81 = vpack.c.b16 %v70, %v69
  %v82 = vpack.c.b16 %v72, %v71
  %v83 = vpack.c.b16 %v74, %v73
  %v84 = vpack.c.b16 %v76, %v75
  %93 = vmatpush.bf16.msra.mxu0 %v84
  %94 = vmatpush.bf16.msra.mxu0 %v83
  %95 = vmatpush.bf16.msra.mxu0 %v82
  %96 = vmatpush.bf16.msra.mxu0 %v81
  %97 = vmatpush.bf16.msra.mxu0 %v80
  %98 = vmatpush.bf16.msra.mxu0 %v79
  %99 = vmatpush.bf16.msra.mxu0 %v78
  %100 = vmatpush.bf16.msra.mxu0 %v77
  %101 = vmatmul.bf16.gmra.mxu0 %v41
  %v102 = vpop.f32.mrf.mxu0
  %v103 = vadd.f32 0.0, %v102
  %v104 = vpop.f32.mrf.mxu0
  %v105 = vadd.f32 0.0, %v104
  %106 = vmatmul.bf16.gmra.mxu0 %v42
  %v107 = vpop.f32.mrf.mxu0
  %v108 = vadd.f32 0.0, %v107
  %v109 = vpop.f32.mrf.mxu0
  %v110 = vadd.f32 0.0, %v109
  %111 = vdwg.mxu0
  %112 = vst [vmem:[%s2] sm:$0xff] %v103
  %113 = vst [vmem:[%s2 + $0x8] sm:$0xff] %v105
  %114 = vst [vmem:[%s2 + $0x10] sm:$0xff] %v108
  %115 = vst [vmem:[%s2 + $0x18] sm:$0xff] %v110
  %v116 = vadd.f32 %v103, %v105
  %v117 = vadd.f32 %v116, %v108
  %v118 = vadd.f32 %v117, %v110
  %v119 = vrot.slane %v118, 4
  %v120 = vadd.f32 %v118, %v119
  %v121 = vrot.slane %v120, 2
  %v122 = vadd.f32 %v120, %v121
  %v123 = vrot.slane %v122, 1
  %v124 = vadd.f32 %v122, %v123
  %v125 = vmul.f32 %v103, %v103
  %v126 = vmul.f32 %v105, %v105
  %v127 = vmul.f32 %v108, %v108
  %v128 = vmul.f32 %v110, %v110
  %v129 = vadd.f32 %v125, %v126
  %v130 = vadd.f32 %v129, %v127
  %v131 = vadd.f32 %v130, %v128
  %v132 = vrot.slane %v131, 4
  %v133 = vadd.f32 %v131, %v132
  %v134 = vrot.slane %v133, 2
  %v135 = vadd.f32 %v133, %v134
  %v136 = vrot.slane %v135, 1
  %v137 = vadd.f32 %v135, %v136
  %vm138 = vcmask 1040384
  %v139 = vsel %vm138, %v124, %v137
  %vm140 = vcmask 1041408
  %v141 = vsel %vm140, %v139, 0.0
  %142 = vst [vmem:[%s3] sm:$0xff] %v141
  // Predicated region
  $region10: #{discriminator_forward.7} parent=0 // pred_check
    _
  $region11: #{discriminator_forward.7} parent=0 // pred_check_branch
    %144 = sbr.rel (0) target = $region13
  $region12: #{discriminator_forward.7} parent=0 // pred_region
    _
  $region13: #{discriminator_forward.7} parent=0 // pred_fallthru
    _
  // Predicated region
  $region14: #{discriminator_forward.7} parent=0 // pred_check
    _
  $region15: #{discriminator_forward.7} parent=0 // pred_check_branch
    %146 = sbr.rel (0) target = $region17
  $region16: #{discriminator_forward.7} parent=0 // pred_region
    _
  $region17: #{discriminator_forward.7} parent=0 // pred_fallthru
    _
  // Predicated region
  $region18: #{discriminator_forward.7} parent=0 // pred_check
    _
  $region19: #{discriminator_forward.7} parent=0 // pred_check_branch
    %148 = sbr.rel (0) target = $region21
  $region20: #{discriminator_forward.7} parent=0 // pred_region
    _
  $region21: #{discriminator_forward.7} parent=0 // pred_fallthru
    _
  // Predicated region
  $region22: #{discriminator_forward.7} parent=0 // pred_check
    _
  $region23: #{discriminator_forward.7} parent=0 // pred_check_branch
    %150 = sbr.rel (0) target = $region25
  $region24: #{discriminator_forward.7} parent=0 // pred_region
    _
  $region25: #{discriminator_forward.7} parent=0 // pred_fallthru
    _

// kernel: discriminator_forward.8
$region0: #{discriminator_forward.8}
  #allocation0 [shape = 'u32[]', space=smem, size = 0x4, offset = 0x4, fixed_abs, tag = 'smem constant byte address 0x4 - core index']
  #allocation1 [shape = 'u32[72,128]{1,0:T(1,128)}', space=vmem, size = 0x9000, scoped, tag = 'internal scratch']
  %s0 = inlined_call_operand.vmem [shape: f32[32,128], index: 0, kind: input, shape index: {}]
  %s1 = inlined_call_operand.vmem [shape: f32[1,128], index: 1, kind: input, shape index: {}]
  %s2 = inlined_call_operand.vmem [shape: f32[1,128], index: 2, kind: input, shape index: {}]
  %s3 = inlined_call_operand.vmem [shape: f32[32,128], index: 3, kind: output, shape index: {}]
  %s4 = sld [smem:[#allocation0]]
  $region22: #{discriminator_forward.8} parent=0
    _
  %s6 = ssub.s32 1, %s4
  %s7 = scalar_select 0, %s6, %s4
  // Predicated region
  $region2: #{discriminator_forward.8} parent=0 // pred_check
    _
  $region3: #{discriminator_forward.8} parent=0 // pred_check_branch
    %9 = sbr.rel (0) target = $region5
  $region4: #{discriminator_forward.8} parent=0 // pred_region
    _
  $region5: #{discriminator_forward.8} parent=0 // pred_fallthru
    _
  // Predicated region
  $region6: #{discriminator_forward.8} parent=0 // pred_check
    _
  $region7: #{discriminator_forward.8} parent=0 // pred_check_branch
    %11 = sbr.rel (0) target = $region9
  $region8: #{discriminator_forward.8} parent=0 // pred_region
    _
  $region9: #{discriminator_forward.8} parent=0 // pred_fallthru
    _
  // Predicated region
  $region10: #{discriminator_forward.8} parent=0 // pred_check
    _
  $region11: #{discriminator_forward.8} parent=0 // pred_check_branch
    %13 = sbr.rel (0) target = $region13
  $region12: #{discriminator_forward.8} parent=0 // pred_region
    _
  $region13: #{discriminator_forward.8} parent=0 // pred_fallthru
    _
  %v14 = vld [vmem:[%s0] sm:$0xff]
  %v15 = vld [vmem:[%s0 + $0x8] sm:$0xff]
  %v16 = vld [vmem:[%s0 + $0x10] sm:$0xff]
  %v17 = vld [vmem:[%s0 + $0x18] sm:$0xff]
  %v18 = vld [vmem:[%s1] sm:$0x1]
  %v20 = vperm.slane %v18, 0
  %v22 = vmul.f32 %v14, %v20
  %v23 = vmul.f32 %v15, %v20
  %v24 = vmul.f32 %v16, %v20
  %v25 = vmul.f32 %v17, %v20
  %v26 = vld [vmem:[%s2] sm:$0x1]
  %v28 = vperm.slane %v26, 0
  %v30 = vadd.f32 %v22, %v28
  %v31 = vadd.f32 %v23, %v28
  %v32 = vadd.f32 %v24, %v28
  %v33 = vadd.f32 %v25, %v28
  %vm34 = vcmp.gt.f32.partialorder %v30, 0.0
  %vm35 = vcmp.gt.f32.partialorder %v31, 0.0
  %vm36 = vcmp.gt.f32.partialorder %v32, 0.0
  %vm37 = vcmp.gt.f32.partialorder %v33, 0.0
  %v38 = vmul.f32 %v30, 0.2
  %v39 = vmul.f32 %v31, 0.2
  %v40 = vmul.f32 %v32, 0.2
  %v41 = vmul.f32 %v33, 0.2
  %v42 = vsel %vm34, %v30, %v38
  %v43 = vsel %vm35, %v31, %v39
  %v44 = vsel %vm36, %v32, %v40
  %v45 = vsel %vm37, %v33, %v41
  %46 = vst [vmem:[%s3] sm:$0xff] %v42
  %47 = vst [vmem:[%s3 + $0x8] sm:$0xff] %v43
  %48 = vst [vmem:[%s3 + $0x10] sm:$0xff] %v44
  %49 = vst [vmem:[%s3 + $0x18] sm:$0xff] %v45
  // Predicated region
  $region14: #{discriminator_forward.8} parent=0 // pred_check
    _
  $region15: #{discriminator_forward.8} parent=0 // pred_check_branch
    %51 = sbr.rel (0) target = $region17
  $region16: #{discriminator_forward.8} parent=0 // pred_region
    _
  $region17: #{discriminator_forward.8} parent=0 // pred_fallthru
    _
  // Predicated region
  $region18: #{discriminator_forward.8} parent=0 // pred_check
    _
  $region19: #{discriminator_forward.8} parent=0 // pred_check_branch
    %53 = sbr.rel (0) target = $region21
  $region20: #{discriminator_forward.8} parent=0 // pred_region
    _
  $region21: #{discriminator_forward.8} parent=0 // pred_fallthru
    _

// kernel: discriminator_forward.10
$region0: #{discriminator_forward.10}
  #allocation0 [shape = 'u32[]', space=smem, size = 0x4, offset = 0x4, fixed_abs, tag = 'smem constant byte address 0x4 - core index']
  #allocation1 [shape = 'u32[72,128]{1,0:T(1,128)}', space=vmem, size = 0x9000, scoped, tag = 'internal scratch']
  %s0 = inlined_call_operand.vmem [shape: f32[8,128], index: 0, kind: input, shape index: {}]
  %s1 = inlined_call_operand.vmem [shape: f32[1,128], index: 1, kind: input, shape index: {}]
  %s2 = inlined_call_operand.vmem [shape: f32[1,128], index: 2, kind: input, shape index: {}]
  %s3 = inlined_call_operand.vmem [shape: f32[8,128], index: 3, kind: output, shape index: {}]
  %s4 = sld [smem:[#allocation0]]
  $region22: #{discriminator_forward.10} parent=0
    _
  %s6 = ssub.s32 1, %s4
  %s7 = scalar_select 0, %s6, %s4
  // Predicated region
  $region2: #{discriminator_forward.10} parent=0 // pred_check
    _
  $region3: #{discriminator_forward.10} parent=0 // pred_check_branch
    %9 = sbr.rel (0) target = $region5
  $region4: #{discriminator_forward.10} parent=0 // pred_region
    _
  $region5: #{discriminator_forward.10} parent=0 // pred_fallthru
    _
  // Predicated region
  $region6: #{discriminator_forward.10} parent=0 // pred_check
    _
  $region7: #{discriminator_forward.10} parent=0 // pred_check_branch
    %11 = sbr.rel (0) target = $region9
  $region8: #{discriminator_forward.10} parent=0 // pred_region
    _
  $region9: #{discriminator_forward.10} parent=0 // pred_fallthru
    _
  // Predicated region
  $region10: #{discriminator_forward.10} parent=0 // pred_check
    _
  $region11: #{discriminator_forward.10} parent=0 // pred_check_branch
    %13 = sbr.rel (0) target = $region13
  $region12: #{discriminator_forward.10} parent=0 // pred_region
    _
  $region13: #{discriminator_forward.10} parent=0 // pred_fallthru
    _
  %v14 = vld [vmem:[%s0] sm:$0xff]
  %v15 = vld [vmem:[%s1] sm:$0x1]
  %v17 = vperm.slane %v15, 0
  %v19 = vmul.f32 %v14, %v17
  %v20 = vld [vmem:[%s2] sm:$0x1]
  %v22 = vperm.slane %v20, 0
  %v24 = vadd.f32 %v19, %v22
  %vm25 = vcmp.gt.f32.partialorder %v24, 0.0
  %v26 = vmul.f32 %v24, 0.2
  %v27 = vsel %vm25, %v24, %v26
  %28 = vst [vmem:[%s3] sm:$0xff] %v27
  // Predicated region
  $region14: #{discriminator_forward.10} parent=0 // pred_check
    _
  $region15: #{discriminator_forward.10} parent=0 // pred_check_branch
    %30 = sbr.rel (0) target = $region17
  $region16: #{discriminator_forward.10} parent=0 // pred_region
    _
  $region17: #{discriminator_forward.10} parent=0 // pred_fallthru
    _
  // Predicated region
  $region18: #{discriminator_forward.10} parent=0 // pred_check
    _
  $region19: #{discriminator_forward.10} parent=0 // pred_check_branch
    %32 = sbr.rel (0) target = $region21
  $region20: #{discriminator_forward.10} parent=0 // pred_region
    _
  $region21: #{discriminator_forward.10} parent=0 // pred_fallthru
    _

// kernel: discriminator_forward.9
$region0: #{discriminator_forward.9}
  #allocation0 [shape = 'u32[]', space=smem, size = 0x4, offset = 0x4, fixed_abs, tag = 'smem constant byte address 0x4 - core index']
  #allocation1 [shape = 'u32[72,128]{1,0:T(1,128)}', space=vmem, size = 0x9000, scoped, tag = 'internal scratch']
  %s0 = inlined_call_operand.vmem [shape: bf16[8,256], index: 0, kind: input, shape index: {}]
  %s1 = inlined_call_operand.vmem [shape: bf16[256,128], index: 1, kind: input, shape index: {}]
  %s2 = inlined_call_operand.vmem [shape: f32[8,128], index: 2, kind: output, shape index: {0}]
  %s3 = inlined_call_operand.vmem [shape: f32[8,128], index: 3, kind: output, shape index: {1}]
  %4 = xla_tuple %s2, %s3
  %s5 = sld [smem:[#allocation0]]
  $region26: #{discriminator_forward.9} parent=0
    _
  %s7 = ssub.s32 1, %s5
  %s8 = scalar_select 0, %s7, %s5
  // Predicated region
  $region2: #{discriminator_forward.9} parent=0 // pred_check
    _
  $region3: #{discriminator_forward.9} parent=0 // pred_check_branch
    %10 = sbr.rel (0) target = $region5
  $region4: #{discriminator_forward.9} parent=0 // pred_region
    _
  $region5: #{discriminator_forward.9} parent=0 // pred_fallthru
    _
  // Predicated region
  $region6: #{discriminator_forward.9} parent=0 // pred_check
    _
  $region7: #{discriminator_forward.9} parent=0 // pred_check_branch
    %12 = sbr.rel (0) target = $region9
  $region8: #{discriminator_forward.9} parent=0 // pred_region
    _
  $region9: #{discriminator_forward.9} parent=0 // pred_fallthru
    _
  %v13 = vld [vmem:[%s0] sm:$0xff]
  %v14 = vld [vmem:[%s1] sm:$0xf]
  %v15 = vld [vmem:[%s1 + $0x4] sm:$0xf]
  %v16 = vld [vmem:[%s1 + $0x8] sm:$0xf]
  %v17 = vld [vmem:[%s1 + $0xc] sm:$0xf]
  %v18 = vld [vmem:[%s1 + $0x10] sm:$0xf]
  %v19 = vld [vmem:[%s1 + $0x14] sm:$0xf]
  %v20 = vld [vmem:[%s1 + $0x18] sm:$0xf]
  %v21 = vld [vmem:[%s1 + $0x1c] sm:$0xf]
  %v22 = vld [vmem:[%s1 + $0x20] sm:$0xf]
  %v23 = vld [vmem:[%s1 + $0x24] sm:$0xf]
  %v24 = vld [vmem:[%s1 + $0x28] sm:$0xf]
  %v25 = vld [vmem:[%s1 + $0x2c] sm:$0xf]
  %v26 = vld [vmem:[%s1 + $0x30] sm:$0xf]
  %v27 = vld [vmem:[%s1 + $0x34] sm:$0xf]
  %v28 = vld [vmem:[%s1 + $0x38] sm:$0xf]
  %v29 = vld [vmem:[%s1 + $0x3c] sm:$0xf]
  %v30 = vld [vmem:[%s1 + $0x40] sm:$0xf]
  %v31 = vld [vmem:[%s1 + $0x44] sm:$0xf]
  %v32 = vld [vmem:[%s1 + $0x48] sm:$0xf]
  %v33 = vld [vmem:[%s1 + $0x4c] sm:$0xf]
  %v34 = vld [vmem:[%s1 + $0x50] sm:$0xf]
  %v35 = vld [vmem:[%s1 + $0x54] sm:$0xf]
  %v36 = vld [vmem:[%s1 + $0x58] sm:$0xf]
  %v37 = vld [vmem:[%s1 + $0x5c] sm:$0xf]
  %v38 = vld [vmem:[%s1 + $0x60] sm:$0xf]
  %v39 = vld [vmem:[%s1 + $0x64] sm:$0xf]
  %v40 = vld [vmem:[%s1 + $0x68] sm:$0xf]
  %v41 = vld [vmem:[%s1 + $0x6c] sm:$0xf]
  %v42 = vld [vmem:[%s1 + $0x70] sm:$0xf]
  %v43 = vld [vmem:[%s1 + $0x74] sm:$0xf]
  %v44 = vld [vmem:[%s1 + $0x78] sm:$0xf]
  %v45 = vld [vmem:[%s1 + $0x7c] sm:$0xf]
  %v47 = vunpack.c.l.b16 %v13
  %v48 = vunpack.c.h.b16 %v13
  %v49 = vpack.c.b16 %v47, %v47
  %v50 = vpack.c.b16 %v48, %v48
  %v85 = vunpack.c.l.b16 %v14
  %v86 = vunpack.c.l.b16 %v15
  %v87 = vunpack.c.l.b16 %v16
  %v88 = vunpack.c.l.b16 %v17
  %v89 = vunpack.c.l.b16 %v18
  %v90 = vunpack.c.l.b16 %v19
  %v91 = vunpack.c.l.b16 %v20
  %v92 = vunpack.c.l.b16 %v21
  %v93 = vunpack.c.l.b16 %v22
  %v94 = vunpack.c.l.b16 %v23
  %v95 = vunpack.c.l.b16 %v24
  %v96 = vunpack.c.l.b16 %v25
  %v97 = vunpack.c.l.b16 %v26
  %v98 = vunpack.c.l.b16 %v27
  %v99 = vunpack.c.l.b16 %v28
  %v100 = vunpack.c.l.b16 %v29
  %v101 = vunpack.c.l.b16 %v30
  %v102 = vunpack.c.l.b16 %v31
  %v103 = vunpack.c.l.b16 %v32
  %v104 = vunpack.c.l.b16 %v33
  %v105 = vunpack.c.l.b16 %v34
  %v106 = vunpack.c.l.b16 %v35
  %v107 = vunpack.c.l.b16 %v36
  %v108 = vunpack.c.l.b16 %v37
  %v109 = vunpack.c.l.b16 %v38
  %v110 = vunpack.c.l.b16 %v39
  %v111 = vunpack.c.l.b16 %v40
  %v112 = vunpack.c.l.b16 %v41
  %v113 = vunpack.c.l.b16 %v42
  %v114 = vunpack.c.l.b16 %v43
  %v115 = vunpack.c.l.b16 %v44
  %v116 = vunpack.c.l.b16 %v45
  %v117 = vpack.c.b16 %v86, %v85
  %v118 = vpack.c.b16 %v88, %v87
  %v119 = vpack.c.b16 %v90, %v89
  %v120 = vpack.c.b16 %v92, %v91
  %v121 = vpack.c.b16 %v94, %v93
  %v122 = vpack.c.b16 %v96, %v95
  %v123 = vpack.c.b16 %v98, %v97
  %v124 = vpack.c.b16 %v100, %v99
  %v125 = vpack.c.b16 %v102, %v101
  %v126 = vpack.c.b16 %v104, %v103
  %v127 = vpack.c.b16 %v106, %v105
  %v128 = vpack.c.b16 %v108, %v107
  %v129 = vpack.c.b16 %v110, %v109
  %v130 = vpack.c.b16 %v112, %v111
  %v131 = vpack.c.b16 %v114, %v113
  %v132 = vpack.c.b16 %v116, %v115
  %149 = vmatpush.bf16.msra.mxu0 %v124
  %150 = vmatpush.bf16.msra.mxu0 %v123
  %151 = vmatpush.bf16.msra.mxu0 %v122
  %152 = vmatpush.bf16.msra.mxu0 %v121
  %153 = vmatpush.bf16.msra.mxu0 %v120
  %154 = vmatpush.bf16.msra.mxu0 %v119
  %155 = vmatpush.bf16.msra.mxu0 %v118
  %156 = vmatpush.bf16.msra.mxu0 %v117
  %157 = vmatmul.bf16.gmra.mxu0 %v49
  %v158 = vpop.f32.mrf.mxu0
  %v159 = vadd.f32 0.0, %v158
  %v160 = vpop.f32.mrf.mxu0
  %161 = vdwg.mxu0
  %162 = vmatpush.bf16.msra.mxu0 %v132
  %163 = vmatpush.bf16.msra.mxu0 %v131
  %164 = vmatpush.bf16.msra.mxu0 %v130
  %165 = vmatpush.bf16.msra.mxu0 %v129
  %166 = vmatpush.bf16.msra.mxu0 %v128
  %167 = vmatpush.bf16.msra.mxu0 %v127
  %168 = vmatpush.bf16.msra.mxu0 %v126
  %169 = vmatpush.bf16.msra.mxu0 %v125
  %170 = vmatmul.bf16.gmra.mxu0 %v50
  %v171 = vpop.f32.mrf.mxu0
  %v172 = vadd.f32 %v159, %v171
  %v173 = vpop.f32.mrf.mxu0
  %174 = vdwg.mxu0
  %175 = vst [vmem:[%s2] sm:$0xff] %v172
  %v176 = vrot.slane %v172, 4
  %v177 = vadd.f32 %v172, %v176
  %v178 = vrot.slane %v177, 2
  %v179 = vadd.f32 %v177, %v178
  %v180 = vrot.slane %v179, 1
  %v181 = vadd.f32 %v179, %v180
  %v182 = vmul.f32 %v172, %v172
  %v183 = vrot.slane %v182, 4
  %v184 = vadd.f32 %v182, %v183
  %v185 = vrot.slane %v184, 2
  %v186 = vadd.f32 %v184, %v185
  %v187 = vrot.slane %v186, 1
  %v188 = vadd.f32 %v186, %v187
  %vm189 = vcmask 1040384
  %v190 = vsel %vm189, %v181, %v188
  %vm191 = vcmask 1041408
  %v192 = vsel %vm191, %v190, 0.0
  %193 = vst [vmem:[%s3] sm:$0xff] %v192
  // Predicated region
  $region10: #{discriminator_forward.9} parent=0 // pred_check
    _
  $region11: #{discriminator_forward.9} parent=0 // pred_check_branch
    %195 = sbr.rel (0) target = $region13
  $region12: #{discriminator_forward.9} parent=0 // pred_region
    _
  $region13: #{discriminator_forward.9} parent=0 // pred_fallthru
    _
  // Predicated region
  $region14: #{discriminator_forward.9} parent=0 // pred_check
    _
  $region15: #{discriminator_forward.9} parent=0 // pred_check_branch
    %197 = sbr.rel (0) target = $region17
  $region16: #{discriminator_forward.9} parent=0 // pred_region
    _
  $region17: #{discriminator_forward.9} parent=0 // pred_fallthru
    _
  // Predicated region
  $region18: #{discriminator_forward.9} parent=0 // pred_check
    _
  $region19: #{discriminator_forward.9} parent=0 // pred_check_branch
    %199 = sbr.rel (0) target = $region21
  $region20: #{discriminator_forward.9} parent=0 // pred_region
    _
  $region21: #{discriminator_forward.9} parent=0 // pred_fallthru
    _
  // Predicated region
  $region22: #{discriminator_forward.9} parent=0 // pred_check
    _
  $region23: #{discriminator_forward.9} parent=0 // pred_check_branch
    %201 = sbr.rel (0) target = $region25
  $region24: #{discriminator_forward.9} parent=0 // pred_region
    _
  $region25: #{discriminator_forward.9} parent=0 // pred_fallthru
    _

// kernel: discriminator_forward.11
$region0: #{discriminator_forward.11}
  #allocation0 [shape = 'u32[]', space=smem, size = 0x4, offset = 0x4, fixed_abs, tag = 'smem constant byte address 0x4 - core index']
  #allocation1 [shape = 'u32[72,128]{1,0:T(1,128)}', space=vmem, size = 0x9000, scoped, tag = 'internal scratch']
  %s0 = inlined_call_operand.vmem [shape: bf16[8,512], index: 0, kind: input, shape index: {}]
  %s1 = inlined_call_operand.vmem [shape: bf16[512,128], index: 1, kind: input, shape index: {}]
  %s2 = inlined_call_operand.vmem [shape: f32[1,128], index: 2, kind: input, shape index: {}]
  %s3 = inlined_call_operand.vmem [shape: f32[8,128], index: 3, kind: output, shape index: {}]
  %s4 = sld [smem:[#allocation0]]
  $region22: #{discriminator_forward.11} parent=0
    _
  %s6 = ssub.s32 1, %s4
  %s7 = scalar_select 0, %s6, %s4
  // Predicated region
  $region2: #{discriminator_forward.11} parent=0 // pred_check
    _
  $region3: #{discriminator_forward.11} parent=0 // pred_check_branch
    %9 = sbr.rel (0) target = $region5
  $region4: #{discriminator_forward.11} parent=0 // pred_region
    _
  $region5: #{discriminator_forward.11} parent=0 // pred_fallthru
    _
  // Predicated region
  $region6: #{discriminator_forward.11} parent=0 // pred_check
    _
  $region7: #{discriminator_forward.11} parent=0 // pred_check_branch
    %11 = sbr.rel (0) target = $region9
  $region8: #{discriminator_forward.11} parent=0 // pred_region
    _
  $region9: #{discriminator_forward.11} parent=0 // pred_fallthru
    _
  // Predicated region
  $region10: #{discriminator_forward.11} parent=0 // pred_check
    _
  $region11: #{discriminator_forward.11} parent=0 // pred_check_branch
    %13 = sbr.rel (0) target = $region13
  $region12: #{discriminator_forward.11} parent=0 // pred_region
    _
  $region13: #{discriminator_forward.11} parent=0 // pred_fallthru
    _
  %v14 = vld [vmem:[%s0] sm:$0xff]
  %v15 = vld [vmem:[%s0 + $0x8] sm:$0xff]
  %v16 = vld [vmem:[%s1] sm:$0xf]
  %v17 = vld [vmem:[%s1 + $0x4] sm:$0xf]
  %v18 = vld [vmem:[%s1 + $0x8] sm:$0xf]
  %v19 = vld [vmem:[%s1 + $0xc] sm:$0xf]
  %v20 = vld [vmem:[%s1 + $0x10] sm:$0xf]
  %v21 = vld [vmem:[%s1 + $0x14] sm:$0xf]
  %v22 = vld [vmem:[%s1 + $0x18] sm:$0xf]
  %v23 = vld [vmem:[%s1 + $0x1c] sm:$0xf]
  %v24 = vld [vmem:[%s1 + $0x20] sm:$0xf]
  %v25 = vld [vmem:[%s1 + $0x24] sm:$0xf]
  %v26 = vld [vmem:[%s1 + $0x28] sm:$0xf]
  %v27 = vld [vmem:[%s1 + $0x2c] sm:$0xf]
  %v28 = vld [vmem:[%s1 + $0x30] sm:$0xf]
  %v29 = vld [vmem:[%s1 + $0x34] sm:$0xf]
  %v30 = vld [vmem:[%s1 + $0x38] sm:$0xf]
  %v31 = vld [vmem:[%s1 + $0x3c] sm:$0xf]
  %v32 = vld [vmem:[%s1 + $0x40] sm:$0xf]
  %v33 = vld [vmem:[%s1 + $0x44] sm:$0xf]
  %v34 = vld [vmem:[%s1 + $0x48] sm:$0xf]
  %v35 = vld [vmem:[%s1 + $0x4c] sm:$0xf]
  %v36 = vld [vmem:[%s1 + $0x50] sm:$0xf]
  %v37 = vld [vmem:[%s1 + $0x54] sm:$0xf]
  %v38 = vld [vmem:[%s1 + $0x58] sm:$0xf]
  %v39 = vld [vmem:[%s1 + $0x5c] sm:$0xf]
  %v40 = vld [vmem:[%s1 + $0x60] sm:$0xf]
  %v41 = vld [vmem:[%s1 + $0x64] sm:$0xf]
  %v42 = vld [vmem:[%s1 + $0x68] sm:$0xf]
  %v43 = vld [vmem:[%s1 + $0x6c] sm:$0xf]
  %v44 = vld [vmem:[%s1 + $0x70] sm:$0xf]
  %v45 = vld [vmem:[%s1 + $0x74] sm:$0xf]
  %v46 = vld [vmem:[%s1 + $0x78] sm:$0xf]
  %v47 = vld [vmem:[%s1 + $0x7c] sm:$0xf]
  %v48 = vld [vmem:[%s1 + $0x80] sm:$0xf]
  %v49 = vld [vmem:[%s1 + $0x84] sm:$0xf]
  %v50 = vld [vmem:[%s1 + $0x88] sm:$0xf]
  %v51 = vld [vmem:[%s1 + $0x8c] sm:$0xf]
  %v52 = vld [vmem:[%s1 + $0x90] sm:$0xf]
  %v53 = vld [vmem:[%s1 + $0x94] sm:$0xf]
  %v54 = vld [vmem:[%s1 + $0x98] sm:$0xf]
  %v55 = vld [vmem:[%s1 + $0x9c] sm:$0xf]
  %v56 = vld [vmem:[%s1 + $0xa0] sm:$0xf]
  %v57 = vld [vmem:[%s1 + $0xa4] sm:$0xf]
  %v58 = vld [vmem:[%s1 + $0xa8] sm:$0xf]
  %v59 = vld [vmem:[%s1 + $0xac] sm:$0xf]
  %v60 = vld [vmem:[%s1 + $0xb0] sm:$0xf]
  %v61 = vld [vmem:[%s1 + $0xb4] sm:$0xf]
  %v62 = vld [vmem:[%s1 + $0xb8] sm:$0xf]
  %v63 = vld [vmem:[%s1 + $0xbc] sm:$0xf]
  %v64 = vld [vmem:[%s1 + $0xc0] sm:$0xf]
  %v65 = vld [vmem:[%s1 + $0xc4] sm:$0xf]
  %v66 = vld [vmem:[%s1 + $0xc8] sm:$0xf]
  %v67 = vld [vmem:[%s1 + $0xcc] sm:$0xf]
  %v68 = vld [vmem:[%s1 + $0xd0] sm:$0xf]
  %v69 = vld [vmem:[%s1 + $0xd4] sm:$0xf]
  %v70 = vld [vmem:[%s1 + $0xd8] sm:$0xf]
  %v71 = vld [vmem:[%s1 + $0xdc] sm:$0xf]
  %v72 = vld [vmem:[%s1 + $0xe0] sm:$0xf]
  %v73 = vld [vmem:[%s1 + $0xe4] sm:$0xf]
  %v74 = vld [vmem:[%s1 + $0xe8] sm:$0xf]
  %v75 = vld [vmem:[%s1 + $0xec] sm:$0xf]
  %v76 = vld [vmem:[%s1 + $0xf0] sm:$0xf]
  %v77 = vld [vmem:[%s1 + $0xf4] sm:$0xf]
  %v78 = vld [vmem:[%s1 + $0xf8] sm:$0xf]
  %v79 = vld [vmem:[%s1 + $0xfc] sm:$0xf]
  %v80 = vld [vmem:[%s2] sm:$0x1]
  %v82 = vperm.slane %v80, 0
  %v86 = vunpack.c.l.b16 %v14
  %v87 = vunpack.c.h.b16 %v14
  %v88 = vunpack.c.l.b16 %v15
  %v89 = vunpack.c.h.b16 %v15
  %v90 = vpack.c.b16 %v86, %v86
  %v91 = vpack.c.b16 %v87, %v87
  %v92 = vpack.c.b16 %v88, %v88
  %v93 = vpack.c.b16 %v89, %v89
  %v162 = vunpack.c.l.b16 %v16
  %v163 = vunpack.c.l.b16 %v17
  %v164 = vunpack.c.l.b16 %v18
  %v165 = vunpack.c.l.b16 %v19
  %v166 = vunpack.c.l.b16 %v20
  %v167 = vunpack.c.l.b16 %v21
  %v168 = vunpack.c.l.b16 %v22
  %v169 = vunpack.c.l.b16 %v23
  %v170 = vunpack.c.l.b16 %v24
  %v171 = vunpack.c.l.b16 %v25
  %v172 = vunpack.c.l.b16 %v26
  %v173 = vunpack.c.l.b16 %v27
  %v174 = vunpack.c.l.b16 %v28
  %v175 = vunpack.c.l.b16 %v29
  %v176 = vunpack.c.l.b16 %v30
  %v177 = vunpack.c.l.b16 %v31
  %v178 = vunpack.c.l.b16 %v32
  %v179 = vunpack.c.l.b16 %v33
  %v180 = vunpack.c.l.b16 %v34
  %v181 = vunpack.c.l.b16 %v35
  %v182 = vunpack.c.l.b16 %v36
  %v183 = vunpack.c.l.b16 %v37
  %v184 = vunpack.c.l.b16 %v38
  %v185 = vunpack.c.l.b16 %v39
  %v186 = vunpack.c.l.b16 %v40
  %v187 = vunpack.c.l.b16 %v41
  %v188 = vunpack.c.l.b16 %v42
  %v189 = vunpack.c.l.b16 %v43
  %v190 = vunpack.c.l.b16 %v44
  %v191 = vunpack.c.l.b16 %v45
  %v192 = vunpack.c.l.b16 %v46
  %v193 = vunpack.c.l.b16 %v47
  %v194 = vunpack.c.l.b16 %v48
  %v195 = vunpack.c.l.b16 %v49
  %v196 = vunpack.c.l.b16 %v50
  %v197 = vunpack.c.l.b16 %v51
  %v198 = vunpack.c.l.b16 %v52
  %v199 = vunpack.c.l.b16 %v53
  %v200 = vunpack.c.l.b16 %v54
  %v201 = vunpack.c.l.b16 %v55
  %v202 = vunpack.c.l.b16 %v56
  %v203 = vunpack.c.l.b16 %v57
  %v204 = vunpack.c.l.b16 %v58
  %v205 = vunpack.c.l.b16 %v59
  %v206 = vunpack.c.l.b16 %v60
  %v207 = vunpack.c.l.b16 %v61
  %v208 = vunpack.c.l.b16 %v62
  %v209 = vunpack.c.l.b16 %v63
  %v210 = vunpack.c.l.b16 %v64
  %v211 = vunpack.c.l.b16 %v65
  %v212 = vunpack.c.l.b16 %v66
  %v213 = vunpack.c.l.b16 %v67
  %v214 = vunpack.c.l.b16 %v68
  %v215 = vunpack.c.l.b16 %v69
  %v216 = vunpack.c.l.b16 %v70
  %v217 = vunpack.c.l.b16 %v71
  %v218 = vunpack.c.l.b16 %v72
  %v219 = vunpack.c.l.b16 %v73
  %v220 = vunpack.c.l.b16 %v74
  %v221 = vunpack.c.l.b16 %v75
  %v222 = vunpack.c.l.b16 %v76
  %v223 = vunpack.c.l.b16 %v77
  %v224 = vunpack.c.l.b16 %v78
  %v225 = vunpack.c.l.b16 %v79
  %v226 = vpack.c.b16 %v163, %v162
  %v227 = vpack.c.b16 %v165, %v164
  %v228 = vpack.c.b16 %v167, %v166
  %v229 = vpack.c.b16 %v169, %v168
  %v230 = vpack.c.b16 %v171, %v170
  %v231 = vpack.c.b16 %v173, %v172
  %v232 = vpack.c.b16 %v175, %v174
  %v233 = vpack.c.b16 %v177, %v176
  %v234 = vpack.c.b16 %v179, %v178
  %v235 = vpack.c.b16 %v181, %v180
  %v236 = vpack.c.b16 %v183, %v182
  %v237 = vpack.c.b16 %v185, %v184
  %v238 = vpack.c.b16 %v187, %v186
  %v239 = vpack.c.b16 %v189, %v188
  %v240 = vpack.c.b16 %v191, %v190
  %v241 = vpack.c.b16 %v193, %v192
  %v242 = vpack.c.b16 %v195, %v194
  %v243 = vpack.c.b16 %v197, %v196
  %v244 = vpack.c.b16 %v199, %v198
  %v245 = vpack.c.b16 %v201, %v200
  %v246 = vpack.c.b16 %v203, %v202
  %v247 = vpack.c.b16 %v205, %v204
  %v248 = vpack.c.b16 %v207, %v206
  %v249 = vpack.c.b16 %v209, %v208
  %v250 = vpack.c.b16 %v211, %v210
  %v251 = vpack.c.b16 %v213, %v212
  %v252 = vpack.c.b16 %v215, %v214
  %v253 = vpack.c.b16 %v217, %v216
  %v254 = vpack.c.b16 %v219, %v218
  %v255 = vpack.c.b16 %v221, %v220
  %v256 = vpack.c.b16 %v223, %v222
  %v257 = vpack.c.b16 %v225, %v224
  %290 = vmatpush.bf16.msra.mxu0 %v233
  %291 = vmatpush.bf16.msra.mxu0 %v232
  %292 = vmatpush.bf16.msra.mxu0 %v231
  %293 = vmatpush.bf16.msra.mxu0 %v230
  %294 = vmatpush.bf16.msra.mxu0 %v229
  %295 = vmatpush.bf16.msra.mxu0 %v228
  %296 = vmatpush.bf16.msra.mxu0 %v227
  %297 = vmatpush.bf16.msra.mxu0 %v226
  %298 = vmatmul.bf16.gmra.mxu0 %v90
  %v299 = vpop.f32.mrf.mxu0
  %v300 = vadd.f32 %v82, %v299
  %v301 = vpop.f32.mrf.mxu0
  %302 = vdwg.mxu0
  %303 = vmatpush.bf16.msra.mxu0 %v241
  %304 = vmatpush.bf16.msra.mxu0 %v240
  %305 = vmatpush.bf16.msra.mxu0 %v239
  %306 = vmatpush.bf16.msra.mxu0 %v238
  %307 = vmatpush.bf16.msra.mxu0 %v237
  %308 = vmatpush.bf16.msra.mxu0 %v236
  %309 = vmatpush.bf16.msra.mxu0 %v235
  %310 = vmatpush.bf16.msra.mxu0 %v234
  %311 = vmatmul.bf16.gmra.mxu0 %v91
  %v312 = vpop.f32.mrf.mxu0
  %v313 = vadd.f32 %v300, %v312
  %v314 = vpop.f32.mrf.mxu0
  %315 = vdwg.mxu0
  %316 = vmatpush.bf16.msra.mxu0 %v249
  %317 = vmatpush.bf16.msra.mxu0 %v248
  %318 = vmatpush.bf16.msra.mxu0 %v247
  %319 = vmatpush.bf16.msra.mxu0 %v246
  %320 = vmatpush.bf16.msra.mxu0 %v245
  %321 = vmatpush.bf16.msra.mxu0 %v244
  %322 = vmatpush.bf16.msra.mxu0 %v243
  %323 = vmatpush.bf16.msra.mxu0 %v242
  %324 = vmatmul.bf16.gmra.mxu0 %v92
  %v325 = vpop.f32.mrf.mxu0
  %v326 = vadd.f32 %v313, %v325
  %v327 = vpop.f32.mrf.mxu0
  %328 = vdwg.mxu0
  %329 = vmatpush.bf16.msra.mxu0 %v257
  %330 = vmatpush.bf16.msra.mxu0 %v256
  %331 = vmatpush.bf16.msra.mxu0 %v255
  %332 = vmatpush.bf16.msra.mxu0 %v254
  %333 = vmatpush.bf16.msra.mxu0 %v253
  %334 = vmatpush.bf16.msra.mxu0 %v252
  %335 = vmatpush.bf16.msra.mxu0 %v251
  %336 = vmatpush.bf16.msra.mxu0 %v250
  %337 = vmatmul.bf16.gmra.mxu0 %v93
  %v338 = vpop.f32.mrf.mxu0
  %v339 = vadd.f32 %v326, %v338
  %v340 = vpop.f32.mrf.mxu0
  %341 = vdwg.mxu0
  %v342 = vsub.f32 0.0, %v339
  %v343 = vmul.f32 %v342, 1.442695
  %v344 = vpow.pop %v343
  %v345 = vadd.f32 %v344, 1.0
  %v346 = vrcp.pop %v345
  %347 = vst [vmem:[%s3] sm:$0xff] %v346
  // Predicated region
  $region14: #{discriminator_forward.11} parent=0 // pred_check
    _
  $region15: #{discriminator_forward.11} parent=0 // pred_check_branch
    %349 = sbr.rel (0) target = $region17
  $region16: #{discriminator_forward.11} parent=0 // pred_region
    _
  $region17: #{discriminator_forward.11} parent=0 // pred_fallthru
    _
  // Predicated region
  $region18: #{discriminator_forward.11} parent=0 // pred_check
    _
  $region19: #{discriminator_forward.11} parent=0 // pred_check_branch
    %351 = sbr.rel (0) target = $region21
  $region20: #{discriminator_forward.11} parent=0 // pred_region
    _
  $region21: #{discriminator_forward.11} parent=0 // pred_fallthru
    _

</llo_original>
